<compile_context>
chip_gen: v7x
topology: tpu7x:2x2x1
jax: 0.10.0
libtpu: 0.0.40
codegen_flags: <defaults>
</compile_context>

<pallas_src>
import jax
import jax.numpy as jnp
from jax.experimental import pallas as pl
from jax.experimental.pallas import tpu as pltpu

# ---------------- model dims (small, consistent with module) -------------
INPUT_DIM = 32
HIDDEN = 32
OUTPUT_DIM = 16
BATCH = 8

# Row offsets of each weight inside the packed [W_ROWS, HIDDEN] slab.
H = HIDDEN
OFF_IN = 0                 # input:        (H,   H)
OFF_FC = OFF_IN + H        # fc (shared):  (H,   H)
OFF_T12 = OFF_FC + H       # transition12: (2H,  H)
OFF_T23 = OFF_T12 + 2 * H  # transition23: (3H,  H)
OFF_T34 = OFF_T23 + 3 * H  # transition34: (4H,  H)
OFF_T45 = OFF_T34 + 4 * H  # transition45: (5H,  H)
OFF_T5O = OFF_T45 + 5 * H  # transition5out: (6H, H)
OFF_OUT = OFF_T5O + 6 * H  # out (padded): (H,   H)   cols OUTPUT_DIM: are 0
W_ROWS = OFF_OUT + H       # = 736


def _dense_mlp_kernel(x_ref, w_ref, b_ref, out_ref, hist_ref):
    n = x_ref.shape[0]

    # ---- load shared weights / biases exactly once -----------------------
    w_fc = w_ref[OFF_FC:OFF_FC + H, :]
    b_in = jnp.broadcast_to(b_ref[0:1, :], (n, H))
    b_fc = jnp.broadcast_to(b_ref[1:2, :], (n, H))
    b_t12 = jnp.broadcast_to(b_ref[2:3, :], (n, H))
    b_t23 = jnp.broadcast_to(b_ref[3:4, :], (n, H))
    b_t34 = jnp.broadcast_to(b_ref[4:5, :], (n, H))
    b_t45 = jnp.broadcast_to(b_ref[5:6, :], (n, H))
    b_t5o = jnp.broadcast_to(b_ref[6:7, :], (n, H))
    b_out = jnp.broadcast_to(b_ref[7:8, :], (n, H))

    def mm(a, w):
        return jnp.dot(a, w, preferred_element_type=jnp.float32)

    def fc_block(v):
        # out_k = fc(relu(fc(v)))  -- same fc weights applied twice
        h = jnp.maximum(mm(v, w_fc) + b_fc, 0.0)
        return mm(h, w_fc) + b_fc

    x = x_ref[...]

    # ---- dense-net chain; history lane-packed into hist_ref --------------
    out0 = mm(x, w_ref[OFF_IN:OFF_IN + H, :]) + b_in
    hist_ref[:, 0:H] = out0

    out1 = fc_block(out0)
    hist_ref[:, H:2 * H] = out1

    c = mm(hist_ref[:, 0:2 * H], w_ref[OFF_T12:OFF_T12 + 2 * H, :]) + b_t12
    out2 = fc_block(c)
    hist_ref[:, 2 * H:3 * H] = out2

    c = mm(hist_ref[:, 0:3 * H], w_ref[OFF_T23:OFF_T23 + 3 * H, :]) + b_t23
    out3 = fc_block(c)
    hist_ref[:, 3 * H:4 * H] = out3

    c = mm(hist_ref[:, 0:4 * H], w_ref[OFF_T34:OFF_T34 + 4 * H, :]) + b_t34
    out4 = fc_block(c)
    hist_ref[:, 4 * H:5 * H] = out4

    c = mm(hist_ref[:, 0:5 * H], w_ref[OFF_T45:OFF_T45 + 5 * H, :]) + b_t45
    out5 = fc_block(c)
    hist_ref[:, 5 * H:6 * H] = out5

    c = mm(hist_ref[:, 0:6 * H], w_ref[OFF_T5O:OFF_T5O + 6 * H, :]) + b_t5o
    # final projection: weight/bias cols >= OUTPUT_DIM are zero-padded, so
    # columns [OUTPUT_DIM:] of `final` are exactly 0 and simply dropped.
    final = mm(c, w_ref[OFF_OUT:OFF_OUT + H, :]) + b_out
    out_ref[...] = final[:, :OUTPUT_DIM].astype(out_ref.dtype)


def _pack_params(params):
    """Pack the 8 (w, b) pairs into one weight slab and one bias slab."""
    (w_in, b_in), (w_fc, b_fc), (w12, b12), (w23, b23), (w34, b34), \
        (w45, b45), (w5o, b5o), (w_out, b_out) = params

    w_out_p = jnp.pad(w_out, ((0, 0), (0, HIDDEN - OUTPUT_DIM)))
    b_out_p = jnp.pad(b_out, (0, HIDDEN - OUTPUT_DIM))

    w_slab = jnp.concatenate(
        [w_in, w_fc, w12, w23, w34, w45, w5o, w_out_p], axis=0
    ).astype(jnp.float32)                     # (736, 32)
    b_slab = jnp.stack(
        [b_in, b_fc, b12, b23, b34, b45, b5o, b_out_p], axis=0
    ).astype(jnp.float32)                     # (8, 32)
    assert w_slab.shape == (W_ROWS, HIDDEN)
    assert b_slab.shape == (8, HIDDEN)
    return w_slab, b_slab


def dense_mlp_forward(x, params, *, block_n=512):
    """x: [N, INPUT_DIM] float32 -> (out, x_temp), both [N, OUTPUT_DIM]."""
    n = x.shape[0]
    w_slab, b_slab = _pack_params(params)

    # Batch tiling: keep weights resident, pipeline/shard the batch axis.
    bm = n if n <= block_n else block_n
    pad = (-n) % bm
    x_p = jnp.pad(x, ((0, pad), (0, 0))) if pad else x
    n_p = n + pad
    grid = (n_p // bm,)

    # Advisory cost estimate (MACs per row: in + 12*fc + transitions + out).
    macs_per_row = H * INPUT_DIM + 12 * H * H + (2 + 3 + 4 + 5 + 6) * H * H + H * H
    cost = pl.CostEstimate(
        flops=2 * n_p * macs_per_row,
        transcendentals=0,
        bytes_accessed=(W_ROWS * H + 8 * H) * 4 + n_p * (INPUT_DIM + OUTPUT_DIM) * 4,
    )

    out = pl.pallas_call(
        _dense_mlp_kernel,
        out_shape=jax.ShapeDtypeStruct((n_p, OUTPUT_DIM), jnp.float32),
        grid_spec=pltpu.PrefetchScalarGridSpec(
            num_scalar_prefetch=0,
            grid=grid,
            in_specs=[
                pl.BlockSpec((bm, INPUT_DIM), lambda i: (i, 0)),     # x tile
                pl.BlockSpec((W_ROWS, HIDDEN), lambda i: (0, 0)),    # resident weights
                pl.BlockSpec((8, HIDDEN), lambda i: (0, 0)),         # resident biases
            ],
            out_specs=pl.BlockSpec((bm, OUTPUT_DIM), lambda i: (i, 0)),
            scratch_shapes=[pltpu.VMEM((bm, 6 * HIDDEN), jnp.float32)],
        ),
        compiler_params=pltpu.CompilerParams(
            dimension_semantics=("parallel",),  # shards batch grid across TCs on v7x
        ),
        cost_estimate=cost,
    )(x_p, w_slab, b_slab)

    if pad:
        out = out[:n]
    # forward returns (out, x_temp) where x_temp is the same tensor
    return out, out


def init_params(key):
    """Deterministic param init. Weights stored as [in_features, out_features]."""
    shapes = [
        (INPUT_DIM, HIDDEN),       # input
        (HIDDEN, HIDDEN),          # fc (shared)
        (2 * HIDDEN, HIDDEN),      # transition12
        (3 * HIDDEN, HIDDEN),      # transition23
        (4 * HIDDEN, HIDDEN),      # transition34
        (5 * HIDDEN, HIDDEN),      # transition45
        (6 * HIDDEN, HIDDEN),      # transition5out
        (HIDDEN, OUTPUT_DIM),      # out
    ]
    params = []
    for shape in shapes:
        key, kw, kb = jax.random.split(key, 3)
        fan_in = shape[0]
        bound = 1.0 / (fan_in ** 0.5)  # matches nn.Linear default init range
        w = jax.random.uniform(kw, shape, jnp.float32, -bound, bound)
        b = jax.random.uniform(kb, (shape[1],), jnp.float32, -bound, bound)
        params.append((w, b))
    return params


def reference_forward(x, params):
    """Pure-JAX reference with identical semantics (for sanity check)."""
    (w_in, b_in), (w_fc, b_fc), (w12, b12), (w23, b23), (w34, b34), \
        (w45, b45), (w5o, b5o), (w_out, b_out) = params

    def lin(v, w, b):
        return v @ w + b

    def fc_block(v):
        return lin(jnp.maximum(lin(v, w_fc, b_fc), 0.0), w_fc, b_fc)

    out0 = lin(x, w_in, b_in)
    out1 = fc_block(out0)
    c01 = lin(jnp.concatenate([out0, out1], 1), w12, b12)
    out2 = fc_block(c01)
    c012 = lin(jnp.concatenate([out0, out1, out2], 1), w23, b23)
    out3 = fc_block(c012)
    c0123 = lin(jnp.concatenate([out0, out1, out2, out3], 1), w34, b34)
    out4 = fc_block(c0123)
    c01234 = lin(jnp.concatenate([out0, out1, out2, out3, out4], 1), w45, b45)
    out5 = fc_block(c01234)
    c012345 = lin(jnp.concatenate([out0, out1, out2, out3, out4, out5], 1), w5o, b5o)
    out = lin(c012345, w_out, b_out)
    return out, out


if __name__ == "__main__":
    key = jax.random.PRNGKey(0)
    key, kx = jax.random.split(key)
    x = jax.random.normal(kx, (BATCH, INPUT_DIM), jnp.float32)
    params = init_params(key)

    out, x_temp = dense_mlp_forward(x, params)
    out = jax.block_until_ready(out)
    x_temp = jax.block_until_ready(x_temp)

    ref_out, _ = reference_forward(x, params)
    assert out.shape == (BATCH, OUTPUT_DIM)
    assert x_temp.shape == (BATCH, OUTPUT_DIM)
    assert jnp.allclose(out, ref_out, atol=1e-4, rtol=1e-4)

    print("KERNEL_OK")
</pallas_src>

<mosaic_0001>
module attributes {stable_mosaic.version = 11 : i64} {
  func.func @_dense_mlp_kernel(%arg0: i32, %arg1: memref<8x32xf32, #tpu.memory_space<vmem>>, %arg2: memref<736x32xf32, #tpu.memory_space<vmem>>, %arg3: memref<8x32xf32, #tpu.memory_space<vmem>>, %arg4: memref<8x16xf32, #tpu.memory_space<vmem>>, %arg5: memref<8x192xf32, #tpu.memory_space<vmem>>) attributes {dimension_semantics = [#tpu.dimension_semantics<parallel>], iteration_bounds = array<i64: 1>, scalar_prefetch = 0 : i64, scratch_operands = 1 : i64, tpu.core_type = #tpu.core_type<tc>, window_params = [{transform_indices = @transform_0, window_bounds = array<i64: 8, 32>}, {pipeline_mode = #tpu.pipeline_mode<synchronous>, transform_indices = @transform_1, window_bounds = array<i64: 736, 32>}, {pipeline_mode = #tpu.pipeline_mode<synchronous>, transform_indices = @transform_2, window_bounds = array<i64: 8, 32>}, {transform_indices = @transform_3, window_bounds = array<i64: 8, 16>}]} {
    %c32 = arith.constant 32 : index
    %c0 = arith.constant 0 : index
    %0 = vector.load %arg2[%c32, %c0] : memref<736x32xf32, #tpu.memory_space<vmem>>, vector<32x32xf32>
    %c0_0 = arith.constant 0 : index
    %c0_1 = arith.constant 0 : index
    %1 = vector.load %arg3[%c0_0, %c0_1] : memref<8x32xf32, #tpu.memory_space<vmem>>, vector<1x32xf32>
    %2 = vector.shape_cast %1 : vector<1x32xf32> to vector<1x32xf32>
    %3 = vector.broadcast %2 : vector<1x32xf32> to vector<8x32xf32>
    %c1 = arith.constant 1 : index
    %c0_2 = arith.constant 0 : index
    %4 = vector.load %arg3[%c1, %c0_2] : memref<8x32xf32, #tpu.memory_space<vmem>>, vector<1x32xf32>
    %5 = vector.shape_cast %4 : vector<1x32xf32> to vector<1x32xf32>
    %6 = vector.broadcast %5 : vector<1x32xf32> to vector<8x32xf32>
    %c2 = arith.constant 2 : index
    %c0_3 = arith.constant 0 : index
    %7 = vector.load %arg3[%c2, %c0_3] : memref<8x32xf32, #tpu.memory_space<vmem>>, vector<1x32xf32>
    %8 = vector.shape_cast %7 : vector<1x32xf32> to vector<1x32xf32>
    %9 = vector.broadcast %8 : vector<1x32xf32> to vector<8x32xf32>
    %c3 = arith.constant 3 : index
    %c0_4 = arith.constant 0 : index
    %10 = vector.load %arg3[%c3, %c0_4] : memref<8x32xf32, #tpu.memory_space<vmem>>, vector<1x32xf32>
    %11 = vector.shape_cast %10 : vector<1x32xf32> to vector<1x32xf32>
    %12 = vector.broadcast %11 : vector<1x32xf32> to vector<8x32xf32>
    %c4 = arith.constant 4 : index
    %c0_5 = arith.constant 0 : index
    %13 = vector.load %arg3[%c4, %c0_5] : memref<8x32xf32, #tpu.memory_space<vmem>>, vector<1x32xf32>
    %14 = vector.shape_cast %13 : vector<1x32xf32> to vector<1x32xf32>
    %15 = vector.broadcast %14 : vector<1x32xf32> to vector<8x32xf32>
    %c5 = arith.constant 5 : index
    %c0_6 = arith.constant 0 : index
    %16 = vector.load %arg3[%c5, %c0_6] : memref<8x32xf32, #tpu.memory_space<vmem>>, vector<1x32xf32>
    %17 = vector.shape_cast %16 : vector<1x32xf32> to vector<1x32xf32>
    %18 = vector.broadcast %17 : vector<1x32xf32> to vector<8x32xf32>
    %c6 = arith.constant 6 : index
    %c0_7 = arith.constant 0 : index
    %19 = vector.load %arg3[%c6, %c0_7] : memref<8x32xf32, #tpu.memory_space<vmem>>, vector<1x32xf32>
    %20 = vector.shape_cast %19 : vector<1x32xf32> to vector<1x32xf32>
    %21 = vector.broadcast %20 : vector<1x32xf32> to vector<8x32xf32>
    %c7 = arith.constant 7 : index
    %c0_8 = arith.constant 0 : index
    %22 = vector.load %arg3[%c7, %c0_8] : memref<8x32xf32, #tpu.memory_space<vmem>>, vector<1x32xf32>
    %23 = vector.shape_cast %22 : vector<1x32xf32> to vector<1x32xf32>
    %24 = vector.broadcast %23 : vector<1x32xf32> to vector<8x32xf32>
    %c0_9 = arith.constant 0 : index
    %c0_10 = arith.constant 0 : index
    %25 = vector.load %arg1[%c0_9, %c0_10] : memref<8x32xf32, #tpu.memory_space<vmem>>, vector<8x32xf32>
    %c0_11 = arith.constant 0 : index
    %c0_12 = arith.constant 0 : index
    %26 = vector.load %arg2[%c0_11, %c0_12] : memref<736x32xf32, #tpu.memory_space<vmem>>, vector<32x32xf32>
    %cst = arith.constant dense<0.000000e+00> : vector<8x32xf32>
    %27 = tpu.matmul %25, %26, %cst {dimension_numbers = #tpu.dot_dimension_numbers<[1], [0], [0], [1], [0, 0, 1, 1], [], []>} : vector<8x32xf32>, vector<32x32xf32>, vector<8x32xf32> -> vector<8x32xf32>
    %28 = arith.addf %27, %3 : vector<8x32xf32>
    %c0_13 = arith.constant 0 : index
    %c0_14 = arith.constant 0 : index
    %29 = vector.load %arg5[%c0_13, %c0_14] : memref<8x192xf32, #tpu.memory_space<vmem>>, vector<8x32xf32>
    tpu.vector_store %arg5[%c0_13, %c0_14], %28 {strides = array<i32>} : memref<8x192xf32, #tpu.memory_space<vmem>>, vector<8x32xf32>,
    %cst_15 = arith.constant dense<0.000000e+00> : vector<8x32xf32>
    %30 = tpu.matmul %28, %0, %cst_15 {dimension_numbers = #tpu.dot_dimension_numbers<[1], [0], [0], [1], [0, 0, 1, 1], [], []>} : vector<8x32xf32>, vector<32x32xf32>, vector<8x32xf32> -> vector<8x32xf32>
    %31 = arith.addf %30, %6 : vector<8x32xf32>
    %cst_16 = arith.constant 0.000000e+00 : f32
    %32 = vector.broadcast %cst_16 : f32 to vector<8x32xf32>
    %33 = arith.maximumf %31, %32 : vector<8x32xf32>
    %cst_17 = arith.constant dense<0.000000e+00> : vector<8x32xf32>
    %34 = tpu.matmul %33, %0, %cst_17 {dimension_numbers = #tpu.dot_dimension_numbers<[1], [0], [0], [1], [0, 0, 1, 1], [], []>} : vector<8x32xf32>, vector<32x32xf32>, vector<8x32xf32> -> vector<8x32xf32>
    %35 = arith.addf %34, %6 : vector<8x32xf32>
    %c0_18 = arith.constant 0 : index
    %c32_19 = arith.constant 32 : index
    %36 = vector.load %arg5[%c0_18, %c32_19] : memref<8x192xf32, #tpu.memory_space<vmem>>, vector<8x32xf32>
    tpu.vector_store %arg5[%c0_18, %c32_19], %35 {strides = array<i32>} : memref<8x192xf32, #tpu.memory_space<vmem>>, vector<8x32xf32>,
    %c0_20 = arith.constant 0 : index
    %c0_21 = arith.constant 0 : index
    %37 = vector.load %arg5[%c0_20, %c0_21] : memref<8x192xf32, #tpu.memory_space<vmem>>, vector<8x64xf32>
    %c64 = arith.constant 64 : index
    %c0_22 = arith.constant 0 : index
    %38 = vector.load %arg2[%c64, %c0_22] : memref<736x32xf32, #tpu.memory_space<vmem>>, vector<64x32xf32>
    %cst_23 = arith.constant dense<0.000000e+00> : vector<8x32xf32>
    %39 = tpu.matmul %37, %38, %cst_23 {dimension_numbers = #tpu.dot_dimension_numbers<[1], [0], [0], [1], [0, 0, 1, 1], [], []>} : vector<8x64xf32>, vector<64x32xf32>, vector<8x32xf32> -> vector<8x32xf32>
    %40 = arith.addf %39, %9 : vector<8x32xf32>
    %cst_24 = arith.constant dense<0.000000e+00> : vector<8x32xf32>
    %41 = tpu.matmul %40, %0, %cst_24 {dimension_numbers = #tpu.dot_dimension_numbers<[1], [0], [0], [1], [0, 0, 1, 1], [], []>} : vector<8x32xf32>, vector<32x32xf32>, vector<8x32xf32> -> vector<8x32xf32>
    %42 = arith.addf %41, %6 : vector<8x32xf32>
    %cst_25 = arith.constant 0.000000e+00 : f32
    %43 = vector.broadcast %cst_25 : f32 to vector<8x32xf32>
    %44 = arith.maximumf %42, %43 : vector<8x32xf32>
    %cst_26 = arith.constant dense<0.000000e+00> : vector<8x32xf32>
    %45 = tpu.matmul %44, %0, %cst_26 {dimension_numbers = #tpu.dot_dimension_numbers<[1], [0], [0], [1], [0, 0, 1, 1], [], []>} : vector<8x32xf32>, vector<32x32xf32>, vector<8x32xf32> -> vector<8x32xf32>
    %46 = arith.addf %45, %6 : vector<8x32xf32>
    %c0_27 = arith.constant 0 : index
    %c64_28 = arith.constant 64 : index
    %47 = vector.load %arg5[%c0_27, %c64_28] : memref<8x192xf32, #tpu.memory_space<vmem>>, vector<8x32xf32>
    tpu.vector_store %arg5[%c0_27, %c64_28], %46 {strides = array<i32>} : memref<8x192xf32, #tpu.memory_space<vmem>>, vector<8x32xf32>,
    %c0_29 = arith.constant 0 : index
    %c0_30 = arith.constant 0 : index
    %48 = vector.load %arg5[%c0_29, %c0_30] : memref<8x192xf32, #tpu.memory_space<vmem>>, vector<8x96xf32>
    %c128 = arith.constant 128 : index
    %c0_31 = arith.constant 0 : index
    %49 = vector.load %arg2[%c128, %c0_31] : memref<736x32xf32, #tpu.memory_space<vmem>>, vector<96x32xf32>
    %cst_32 = arith.constant dense<0.000000e+00> : vector<8x32xf32>
    %50 = tpu.matmul %48, %49, %cst_32 {dimension_numbers = #tpu.dot_dimension_numbers<[1], [0], [0], [1], [0, 0, 1, 1], [], []>} : vector<8x96xf32>, vector<96x32xf32>, vector<8x32xf32> -> vector<8x32xf32>
    %51 = arith.addf %50, %12 : vector<8x32xf32>
    %cst_33 = arith.constant dense<0.000000e+00> : vector<8x32xf32>
    %52 = tpu.matmul %51, %0, %cst_33 {dimension_numbers = #tpu.dot_dimension_numbers<[1], [0], [0], [1], [0, 0, 1, 1], [], []>} : vector<8x32xf32>, vector<32x32xf32>, vector<8x32xf32> -> vector<8x32xf32>
    %53 = arith.addf %52, %6 : vector<8x32xf32>
    %cst_34 = arith.constant 0.000000e+00 : f32
    %54 = vector.broadcast %cst_34 : f32 to vector<8x32xf32>
    %55 = arith.maximumf %53, %54 : vector<8x32xf32>
    %cst_35 = arith.constant dense<0.000000e+00> : vector<8x32xf32>
    %56 = tpu.matmul %55, %0, %cst_35 {dimension_numbers = #tpu.dot_dimension_numbers<[1], [0], [0], [1], [0, 0, 1, 1], [], []>} : vector<8x32xf32>, vector<32x32xf32>, vector<8x32xf32> -> vector<8x32xf32>
    %57 = arith.addf %56, %6 : vector<8x32xf32>
    %c0_36 = arith.constant 0 : index
    %c96 = arith.constant 96 : index
    %58 = vector.load %arg5[%c0_36, %c96] : memref<8x192xf32, #tpu.memory_space<vmem>>, vector<8x32xf32>
    tpu.vector_store %arg5[%c0_36, %c96], %57 {strides = array<i32>} : memref<8x192xf32, #tpu.memory_space<vmem>>, vector<8x32xf32>,
    %c0_37 = arith.constant 0 : index
    %c0_38 = arith.constant 0 : index
    %59 = vector.load %arg5[%c0_37, %c0_38] : memref<8x192xf32, #tpu.memory_space<vmem>>, vector<8x128xf32>
    %c224 = arith.constant 224 : index
    %c0_39 = arith.constant 0 : index
    %60 = vector.load %arg2[%c224, %c0_39] : memref<736x32xf32, #tpu.memory_space<vmem>>, vector<128x32xf32>
    %cst_40 = arith.constant dense<0.000000e+00> : vector<8x32xf32>
    %61 = tpu.matmul %59, %60, %cst_40 {dimension_numbers = #tpu.dot_dimension_numbers<[1], [0], [0], [1], [0, 0, 1, 1], [], []>} : vector<8x128xf32>, vector<128x32xf32>, vector<8x32xf32> -> vector<8x32xf32>
    %62 = arith.addf %61, %15 : vector<8x32xf32>
    %cst_41 = arith.constant dense<0.000000e+00> : vector<8x32xf32>
    %63 = tpu.matmul %62, %0, %cst_41 {dimension_numbers = #tpu.dot_dimension_numbers<[1], [0], [0], [1], [0, 0, 1, 1], [], []>} : vector<8x32xf32>, vector<32x32xf32>, vector<8x32xf32> -> vector<8x32xf32>
    %64 = arith.addf %63, %6 : vector<8x32xf32>
    %cst_42 = arith.constant 0.000000e+00 : f32
    %65 = vector.broadcast %cst_42 : f32 to vector<8x32xf32>
    %66 = arith.maximumf %64, %65 : vector<8x32xf32>
    %cst_43 = arith.constant dense<0.000000e+00> : vector<8x32xf32>
    %67 = tpu.matmul %66, %0, %cst_43 {dimension_numbers = #tpu.dot_dimension_numbers<[1], [0], [0], [1], [0, 0, 1, 1], [], []>} : vector<8x32xf32>, vector<32x32xf32>, vector<8x32xf32> -> vector<8x32xf32>
    %68 = arith.addf %67, %6 : vector<8x32xf32>
    %c0_44 = arith.constant 0 : index
    %c128_45 = arith.constant 128 : index
    %69 = vector.load %arg5[%c0_44, %c128_45] : memref<8x192xf32, #tpu.memory_space<vmem>>, vector<8x32xf32>
    tpu.vector_store %arg5[%c0_44, %c128_45], %68 {strides = array<i32>} : memref<8x192xf32, #tpu.memory_space<vmem>>, vector<8x32xf32>,
    %c0_46 = arith.constant 0 : index
    %c0_47 = arith.constant 0 : index
    %70 = vector.load %arg5[%c0_46, %c0_47] : memref<8x192xf32, #tpu.memory_space<vmem>>, vector<8x160xf32>
    %c352 = arith.constant 352 : index
    %c0_48 = arith.constant 0 : index
    %71 = vector.load %arg2[%c352, %c0_48] : memref<736x32xf32, #tpu.memory_space<vmem>>, vector<160x32xf32>
    %cst_49 = arith.constant dense<0.000000e+00> : vector<8x32xf32>
    %72 = tpu.matmul %70, %71, %cst_49 {dimension_numbers = #tpu.dot_dimension_numbers<[1], [0], [0], [1], [0, 0, 1, 1], [], []>} : vector<8x160xf32>, vector<160x32xf32>, vector<8x32xf32> -> vector<8x32xf32>
    %73 = arith.addf %72, %18 : vector<8x32xf32>
    %cst_50 = arith.constant dense<0.000000e+00> : vector<8x32xf32>
    %74 = tpu.matmul %73, %0, %cst_50 {dimension_numbers = #tpu.dot_dimension_numbers<[1], [0], [0], [1], [0, 0, 1, 1], [], []>} : vector<8x32xf32>, vector<32x32xf32>, vector<8x32xf32> -> vector<8x32xf32>
    %75 = arith.addf %74, %6 : vector<8x32xf32>
    %cst_51 = arith.constant 0.000000e+00 : f32
    %76 = vector.broadcast %cst_51 : f32 to vector<8x32xf32>
    %77 = arith.maximumf %75, %76 : vector<8x32xf32>
    %cst_52 = arith.constant dense<0.000000e+00> : vector<8x32xf32>
    %78 = tpu.matmul %77, %0, %cst_52 {dimension_numbers = #tpu.dot_dimension_numbers<[1], [0], [0], [1], [0, 0, 1, 1], [], []>} : vector<8x32xf32>, vector<32x32xf32>, vector<8x32xf32> -> vector<8x32xf32>
    %79 = arith.addf %78, %6 : vector<8x32xf32>
    %c0_53 = arith.constant 0 : index
    %c160 = arith.constant 160 : index
    %80 = vector.load %arg5[%c0_53, %c160] : memref<8x192xf32, #tpu.memory_space<vmem>>, vector<8x32xf32>
    tpu.vector_store %arg5[%c0_53, %c160], %79 {strides = array<i32>} : memref<8x192xf32, #tpu.memory_space<vmem>>, vector<8x32xf32>,
    %c0_54 = arith.constant 0 : index
    %c0_55 = arith.constant 0 : index
    %81 = vector.load %arg5[%c0_54, %c0_55] : memref<8x192xf32, #tpu.memory_space<vmem>>, vector<8x192xf32>
    %c512 = arith.constant 512 : index
    %c0_56 = arith.constant 0 : index
    %82 = vector.load %arg2[%c512, %c0_56] : memref<736x32xf32, #tpu.memory_space<vmem>>, vector<192x32xf32>
    %cst_57 = arith.constant dense<0.000000e+00> : vector<8x32xf32>
    %83 = tpu.matmul %81, %82, %cst_57 {dimension_numbers = #tpu.dot_dimension_numbers<[1], [0], [0], [1], [0, 0, 1, 1], [], []>} : vector<8x192xf32>, vector<192x32xf32>, vector<8x32xf32> -> vector<8x32xf32>
    %84 = arith.addf %83, %21 : vector<8x32xf32>
    %c704 = arith.constant 704 : index
    %c0_58 = arith.constant 0 : index
    %85 = vector.load %arg2[%c704, %c0_58] : memref<736x32xf32, #tpu.memory_space<vmem>>, vector<32x32xf32>
    %cst_59 = arith.constant dense<0.000000e+00> : vector<8x32xf32>
    %86 = tpu.matmul %84, %85, %cst_59 {dimension_numbers = #tpu.dot_dimension_numbers<[1], [0], [0], [1], [0, 0, 1, 1], [], []>} : vector<8x32xf32>, vector<32x32xf32>, vector<8x32xf32> -> vector<8x32xf32>
    %87 = arith.addf %86, %24 : vector<8x32xf32>
    %88 = vector.extract_strided_slice %87 {offsets = [0, 0], sizes = [8, 16], strides = [1, 1]} : vector<8x32xf32> to vector<8x16xf32>
    %c0_60 = arith.constant 0 : index
    %c0_61 = arith.constant 0 : index
    %89 = vector.load %arg4[%c0_60, %c0_61] : memref<8x16xf32, #tpu.memory_space<vmem>>, vector<8x16xf32>
    tpu.vector_store %arg4[%c0_60, %c0_61], %88 {strides = array<i32>} : memref<8x16xf32, #tpu.memory_space<vmem>>, vector<8x16xf32>,
    return
  }
  func.func @transform_0(%arg0: i32) -> (i32, i32) {
    %c0_i32 = arith.constant 0 : i32
    %c0_i32_0 = arith.constant 0 : i32
    return %arg0, %c0_i32 : i32, i32
  }
  func.func @transform_1(%arg0: i32) -> (i32, i32) {
    %c0_i32 = arith.constant 0 : i32
    %c0_i32_0 = arith.constant 0 : i32
    %c0_i32_1 = arith.constant 0 : i32
    return %c0_i32, %c0_i32_0 : i32, i32
  }
  func.func @transform_2(%arg0: i32) -> (i32, i32) {
    %c0_i32 = arith.constant 0 : i32
    %c0_i32_0 = arith.constant 0 : i32
    %c0_i32_1 = arith.constant 0 : i32
    return %c0_i32, %c0_i32_0 : i32, i32
  }
  func.func @transform_3(%arg0: i32) -> (i32, i32) {
    %c0_i32 = arith.constant 0 : i32
    %c0_i32_0 = arith.constant 0 : i32
    return %arg0, %c0_i32 : i32, i32
  }
}

</mosaic_0001>

<llo_original>
// kernel: tpu_custom_call.1
$region0: #{tpu_custom_call.1}
  #allocation0 [shape = 'u32[]', space=smem, size = 0x4, offset = 0x4, fixed_abs, tag = 'smem constant byte address 0x4 - core index']
  #allocation1 [shape = 'u32[144,128]{1,0:T(1,128)}', space=vmem, size = 0x12000, scoped, tag = 'internal scratch']
  #allocation2 [shape = 'f32[8,192]{1,0:T(8,128)}', space=vmem, size = 0x2000, scoped, tag = 'scratch operand']
  %s0 = inlined_call_operand.vmem [shape: f32[8,32], index: 0, kind: input, shape index: {}]
  %s1 = inlined_call_operand.vmem [shape: f32[736,32], index: 1, kind: input, shape index: {}]
  %s2 = inlined_call_operand.vmem [shape: f32[8,32], index: 2, kind: input, shape index: {}]
  %s3 = inlined_call_operand.hbm [shape: f32[8,16], index: 3, kind: output, shape index: {}]
  %s4 = sld [smem:[#allocation0]]
  $region22: #{tpu_custom_call.1} parent=0
    _
  %s6 = ssub.s32 1, %s4
  %s7 = scalar_select 0, %s6, %s4
  $region1: #{tpu_custom_call.1} parent=0
    #allocation3 [shape = 'u8[4096]{0}', space=vmem, size = 0x1000, scoped, tag = 'output window, operand 0, single buffered']
    #allocation4 [shape = 's32[1]{0}', space=sflag, size = 0x4, scoped, tag = 'scoped memory for tpu_custom_call.1']
    %8 = vsyncpa [#allocation4], 0
    // Predicated region
    $region2: #{tpu_custom_call.1} parent=1 // pred_check
      _
    $region3: #{tpu_custom_call.1} parent=1 // pred_check_branch
      %10 = sbr.rel (0) target = $region5
    $region4: #{tpu_custom_call.1} parent=1 // pred_region
      _
    $region5: #{tpu_custom_call.1} parent=1 // pred_fallthru
      _
    // Predicated region
    $region6: #{tpu_custom_call.1} parent=1 // pred_check
      _
    $region7: #{tpu_custom_call.1} parent=1 // pred_check_branch
      %12 = sbr.rel (0) target = $region9
    $region8: #{tpu_custom_call.1} parent=1 // pred_region
      _
    $region9: #{tpu_custom_call.1} parent=1 // pred_fallthru
      _
    // Predicated region
    $region10: #{tpu_custom_call.1} parent=1 // pred_check
      _
    $region11: #{tpu_custom_call.1} parent=1 // pred_check_branch
      %14 = sbr.rel (0) target = $region13
    $region12: #{tpu_custom_call.1} parent=1 // pred_region
      _
    $region13: #{tpu_custom_call.1} parent=1 // pred_fallthru
      _
    %v15 = vld [vmem:[%s1 + $0x20] sm:$0xff]
    %v16 = vld [vmem:[%s1 + $0x28] sm:$0xff]
    %v17 = vld [vmem:[%s1 + $0x30] sm:$0xff]
    %v18 = vld [vmem:[%s1 + $0x38] sm:$0xff]
    %v19 = vld [vmem:[%s2] sm:$0x1]
    %v20 = vlaneseq
    %v21 = vshrl.u32 %v20, 7
    %v22 = vsub.s32 0, %v21
    %v23 = vrot.slane %v19, %v22
    %v24 = vld [vmem:[%s2 + $0x1] sm:$0x1]
    %v25 = vlaneseq
    %v26 = vshrl.u32 %v25, 7
    %v27 = vsub.s32 0, %v26
    %v28 = vrot.slane %v24, %v27
    %v29 = vld [vmem:[%s2 + $0x2] sm:$0x1]
    %v30 = vlaneseq
    %v31 = vshrl.u32 %v30, 7
    %v32 = vsub.s32 0, %v31
    %v33 = vrot.slane %v29, %v32
    %v34 = vld [vmem:[%s2 + $0x3] sm:$0x1]
    %v35 = vlaneseq
    %v36 = vshrl.u32 %v35, 7
    %v37 = vsub.s32 0, %v36
    %v38 = vrot.slane %v34, %v37
    %v39 = vld [vmem:[%s2 + $0x4] sm:$0x1]
    %v40 = vlaneseq
    %v41 = vshrl.u32 %v40, 7
    %v42 = vsub.s32 0, %v41
    %v43 = vrot.slane %v39, %v42
    %v44 = vld [vmem:[%s2 + $0x5] sm:$0x1]
    %v45 = vlaneseq
    %v46 = vshrl.u32 %v45, 7
    %v47 = vsub.s32 0, %v46
    %v48 = vrot.slane %v44, %v47
    %v49 = vld [vmem:[%s2 + $0x6] sm:$0x1]
    %v50 = vlaneseq
    %v51 = vshrl.u32 %v50, 7
    %v52 = vsub.s32 0, %v51
    %v53 = vrot.slane %v49, %v52
    %v54 = vld [vmem:[%s2 + $0x7] sm:$0x1]
    %v55 = vlaneseq
    %v56 = vshrl.u32 %v55, 7
    %v57 = vsub.s32 0, %v56
    %v58 = vrot.slane %v54, %v57
    %v59 = vld [vmem:[%s0] sm:$0xff]
    %v60 = vld [vmem:[%s1] sm:$0xff]
    %v61 = vld [vmem:[%s1 + $0x8] sm:$0xff]
    %v62 = vld [vmem:[%s1 + $0x10] sm:$0xff]
    %v63 = vld [vmem:[%s1 + $0x18] sm:$0xff]
    %vm64 = vcmask 261120
    %v66 = vsel %vm64, %v59, 0
    %68 = vmatprep.subr.mxu0 0.0
    %69 = vmatpush1.msra.mxu0 %v60
    %70 = vmatprep.subr.mxu0 0.0
    %71 = vmatpush1.msra.mxu0 %v61
    %72 = vmatprep.subr.mxu0 0.0
    %73 = vmatpush1.msra.mxu0 %v62
    %74 = vmatprep.subr.mxu0 0.0
    %75 = vmatpush1.msra.mxu0 %v63
    %76 = vmatprep.subr.mxu0 0.0
    %77 = vmatpush1.msra.mxu0 0.0
    %78 = vmatprep.subr.mxu0 0.0
    %79 = vmatpush1.msra.mxu0 0.0
    %80 = vmatprep.subr.mxu0 0.0
    %81 = vmatpush1.msra.mxu0 0.0
    %82 = vmatprep.subr.mxu0 0.0
    %83 = vmatpush1.msra.mxu0 0.0
    %84 = vmatprep.subr.mxu0 0.0
    %85 = vmatpush1.msra.mxu0 0.0
    %86 = vmatprep.subr.mxu0 0.0
    %87 = vmatpush1.msra.mxu0 0.0
    %88 = vmatprep.subr.mxu0 0.0
    %89 = vmatpush1.msra.mxu0 0.0
    %90 = vmatprep.subr.mxu0 0.0
    %91 = vmatpush1.msra.mxu0 0.0
    %92 = vmatprep.subr.mxu0 0.0
    %93 = vmatpush1.msra.mxu0 0.0
    %94 = vmatprep.subr.mxu0 0.0
    %95 = vmatpush1.msra.mxu0 0.0
    %96 = vmatprep.subr.mxu0 0.0
    %97 = vmatpush1.msra.mxu0 0.0
    %98 = vmatprep.subr.mxu0 0.0
    %99 = vmatpush1.msra.mxu0 0.0
    %100 = vmatprep.subr.mxu0 0.0
    %101 = vmatpush1.msra.mxu0 0.0
    %102 = vmatprep.subr.mxu0 0.0
    %103 = vmatpush1.msra.mxu0 0.0
    %104 = vmatprep.subr.mxu0 0.0
    %105 = vmatpush1.msra.mxu0 0.0
    %106 = vmatprep.subr.mxu0 0.0
    %107 = vmatpush1.msra.mxu0 0.0
    %108 = vmatprep.subr.mxu0 0.0
    %109 = vmatpush1.msra.mxu0 0.0
    %110 = vmatprep.subr.mxu0 0.0
    %111 = vmatpush1.msra.mxu0 0.0
    %112 = vmatprep.subr.mxu0 0.0
    %113 = vmatpush1.msra.mxu0 0.0
    %114 = vmatprep.subr.mxu0 0.0
    %115 = vmatpush1.msra.mxu0 0.0
    %116 = vmatprep.subr.mxu0 0.0
    %117 = vmatpush1.msra.mxu0 0.0
    %118 = vmatprep.subr.mxu0 0.0
    %119 = vmatpush1.msra.mxu0 0.0
    %120 = vmatprep.subr.mxu0 0.0
    %121 = vmatpush1.msra.mxu0 0.0
    %122 = vmatprep.subr.mxu0 0.0
    %123 = vmatpush1.msra.mxu0 0.0
    %124 = vmatprep.subr.mxu0 0.0
    %125 = vmatpush1.msra.mxu0 0.0
    %126 = vmatprep.subr.mxu0 0.0
    %127 = vmatpush1.msra.mxu0 0.0
    %128 = vmatprep.subr.mxu0 0.0
    %129 = vmatpush1.msra.mxu0 0.0
    %130 = vmatprep.subr.mxu0 0.0
    %131 = vmatpush1.msra.mxu0 0.0
    %132 = vmatprep.mubr.f32.mxu0 0.0
    %133 = vmatmul.mubr.f32.gmra.mrb[0].mxu0 %v66
    %v134 = vpop.f32.mrb[0].mxu0
    %v135 = vadd.f32 %v23, %v134
    %v136 = vpop.f32.mrb[0].mxu0
    %137 = vdwg.mxu0
    %138 = vst.msk [vmem:[#allocation2] sm:$0xff] %vm64, %v135
    %v140 = vsel %vm64, %v135, 0
    %142 = vmatprep.subr.mxu0 0.0
    %143 = vmatpush1.msra.mxu0 %v15
    %144 = vmatprep.subr.mxu0 0.0
    %145 = vmatpush1.msra.mxu0 %v16
    %146 = vmatprep.subr.mxu0 0.0
    %147 = vmatpush1.msra.mxu0 %v17
    %148 = vmatprep.subr.mxu0 0.0
    %149 = vmatpush1.msra.mxu0 %v18
    %150 = vmatprep.subr.mxu0 0.0
    %151 = vmatpush1.msra.mxu0 0.0
    %152 = vmatprep.subr.mxu0 0.0
    %153 = vmatpush1.msra.mxu0 0.0
    %154 = vmatprep.subr.mxu0 0.0
    %155 = vmatpush1.msra.mxu0 0.0
    %156 = vmatprep.subr.mxu0 0.0
    %157 = vmatpush1.msra.mxu0 0.0
    %158 = vmatprep.subr.mxu0 0.0
    %159 = vmatpush1.msra.mxu0 0.0
    %160 = vmatprep.subr.mxu0 0.0
    %161 = vmatpush1.msra.mxu0 0.0
    %162 = vmatprep.subr.mxu0 0.0
    %163 = vmatpush1.msra.mxu0 0.0
    %164 = vmatprep.subr.mxu0 0.0
    %165 = vmatpush1.msra.mxu0 0.0
    %166 = vmatprep.subr.mxu0 0.0
    %167 = vmatpush1.msra.mxu0 0.0
    %168 = vmatprep.subr.mxu0 0.0
    %169 = vmatpush1.msra.mxu0 0.0
    %170 = vmatprep.subr.mxu0 0.0
    %171 = vmatpush1.msra.mxu0 0.0
    %172 = vmatprep.subr.mxu0 0.0
    %173 = vmatpush1.msra.mxu0 0.0
    %174 = vmatprep.subr.mxu0 0.0
    %175 = vmatpush1.msra.mxu0 0.0
    %176 = vmatprep.subr.mxu0 0.0
    %177 = vmatpush1.msra.mxu0 0.0
    %178 = vmatprep.subr.mxu0 0.0
    %179 = vmatpush1.msra.mxu0 0.0
    %180 = vmatprep.subr.mxu0 0.0
    %181 = vmatpush1.msra.mxu0 0.0
    %182 = vmatprep.subr.mxu0 0.0
    %183 = vmatpush1.msra.mxu0 0.0
    %184 = vmatprep.subr.mxu0 0.0
    %185 = vmatpush1.msra.mxu0 0.0
    %186 = vmatprep.subr.mxu0 0.0
    %187 = vmatpush1.msra.mxu0 0.0
    %188 = vmatprep.subr.mxu0 0.0
    %189 = vmatpush1.msra.mxu0 0.0
    %190 = vmatprep.subr.mxu0 0.0
    %191 = vmatpush1.msra.mxu0 0.0
    %192 = vmatprep.subr.mxu0 0.0
    %193 = vmatpush1.msra.mxu0 0.0
    %194 = vmatprep.subr.mxu0 0.0
    %195 = vmatpush1.msra.mxu0 0.0
    %196 = vmatprep.subr.mxu0 0.0
    %197 = vmatpush1.msra.mxu0 0.0
    %198 = vmatprep.subr.mxu0 0.0
    %199 = vmatpush1.msra.mxu0 0.0
    %200 = vmatprep.subr.mxu0 0.0
    %201 = vmatpush1.msra.mxu0 0.0
    %202 = vmatprep.subr.mxu0 0.0
    %203 = vmatpush1.msra.mxu0 0.0
    %204 = vmatprep.subr.mxu0 0.0
    %205 = vmatpush1.msra.mxu0 0.0
    %206 = vmatprep.mubr.f32.mxu0 0.0
    %207 = vmatmul.mubr.f32.gmra.mrb[0].mxu0 %v140
    %v208 = vpop.f32.mrb[0].mxu0
    %v209 = vadd.f32 %v28, %v208
    %v210 = vpop.f32.mrb[0].mxu0
    %211 = vdwg.mxu0
    %v212 = vmax.f32 %v209, 0.0
    %v214 = vsel %vm64, %v212, 0
    %216 = vmatprep.subr.mxu0 0.0
    %217 = vmatpush1.msra.mxu0 %v15
    %218 = vmatprep.subr.mxu0 0.0
    %219 = vmatpush1.msra.mxu0 %v16
    %220 = vmatprep.subr.mxu0 0.0
    %221 = vmatpush1.msra.mxu0 %v17
    %222 = vmatprep.subr.mxu0 0.0
    %223 = vmatpush1.msra.mxu0 %v18
    %224 = vmatprep.subr.mxu0 0.0
    %225 = vmatpush1.msra.mxu0 0.0
    %226 = vmatprep.subr.mxu0 0.0
    %227 = vmatpush1.msra.mxu0 0.0
    %228 = vmatprep.subr.mxu0 0.0
    %229 = vmatpush1.msra.mxu0 0.0
    %230 = vmatprep.subr.mxu0 0.0
    %231 = vmatpush1.msra.mxu0 0.0
    %232 = vmatprep.subr.mxu0 0.0
    %233 = vmatpush1.msra.mxu0 0.0
    %234 = vmatprep.subr.mxu0 0.0
    %235 = vmatpush1.msra.mxu0 0.0
    %236 = vmatprep.subr.mxu0 0.0
    %237 = vmatpush1.msra.mxu0 0.0
    %238 = vmatprep.subr.mxu0 0.0
    %239 = vmatpush1.msra.mxu0 0.0
    %240 = vmatprep.subr.mxu0 0.0
    %241 = vmatpush1.msra.mxu0 0.0
    %242 = vmatprep.subr.mxu0 0.0
    %243 = vmatpush1.msra.mxu0 0.0
    %244 = vmatprep.subr.mxu0 0.0
    %245 = vmatpush1.msra.mxu0 0.0
    %246 = vmatprep.subr.mxu0 0.0
    %247 = vmatpush1.msra.mxu0 0.0
    %248 = vmatprep.subr.mxu0 0.0
    %249 = vmatpush1.msra.mxu0 0.0
    %250 = vmatprep.subr.mxu0 0.0
    %251 = vmatpush1.msra.mxu0 0.0
    %252 = vmatprep.subr.mxu0 0.0
    %253 = vmatpush1.msra.mxu0 0.0
    %254 = vmatprep.subr.mxu0 0.0
    %255 = vmatpush1.msra.mxu0 0.0
    %256 = vmatprep.subr.mxu0 0.0
    %257 = vmatpush1.msra.mxu0 0.0
    %258 = vmatprep.subr.mxu0 0.0
    %259 = vmatpush1.msra.mxu0 0.0
    %260 = vmatprep.subr.mxu0 0.0
    %261 = vmatpush1.msra.mxu0 0.0
    %262 = vmatprep.subr.mxu0 0.0
    %263 = vmatpush1.msra.mxu0 0.0
    %264 = vmatprep.subr.mxu0 0.0
    %265 = vmatpush1.msra.mxu0 0.0
    %266 = vmatprep.subr.mxu0 0.0
    %267 = vmatpush1.msra.mxu0 0.0
    %268 = vmatprep.subr.mxu0 0.0
    %269 = vmatpush1.msra.mxu0 0.0
    %270 = vmatprep.subr.mxu0 0.0
    %271 = vmatpush1.msra.mxu0 0.0
    %272 = vmatprep.subr.mxu0 0.0
    %273 = vmatpush1.msra.mxu0 0.0
    %274 = vmatprep.subr.mxu0 0.0
    %275 = vmatpush1.msra.mxu0 0.0
    %276 = vmatprep.subr.mxu0 0.0
    %277 = vmatpush1.msra.mxu0 0.0
    %278 = vmatprep.subr.mxu0 0.0
    %279 = vmatpush1.msra.mxu0 0.0
    %280 = vmatprep.mubr.f32.mxu0 0.0
    %281 = vmatmul.mubr.f32.gmra.mrb[0].mxu0 %v214
    %v282 = vpop.f32.mrb[0].mxu0
    %v283 = vadd.f32 %v28, %v282
    %v284 = vpop.f32.mrb[0].mxu0
    %285 = vdwg.mxu0
    %287 = vrot.lane.b32.xlu0 %v283, 32
    %v288 = vpop.permute.xlu0 %287
    %vm290 = vcmask 523520
    %291 = vst.msk [vmem:[#allocation2] sm:$0xff] %vm290, %v288
    %v292 = vld [vmem:[#allocation2] sm:$0xff]
    %v293 = vld [vmem:[%s1 + $0x40] sm:$0xff]
    %v294 = vld [vmem:[%s1 + $0x48] sm:$0xff]
    %v295 = vld [vmem:[%s1 + $0x50] sm:$0xff]
    %v296 = vld [vmem:[%s1 + $0x58] sm:$0xff]
    %v297 = vld [vmem:[%s1 + $0x60] sm:$0xff]
    %v298 = vld [vmem:[%s1 + $0x68] sm:$0xff]
    %v299 = vld [vmem:[%s1 + $0x70] sm:$0xff]
    %v300 = vld [vmem:[%s1 + $0x78] sm:$0xff]
    %vm301 = vcmask 523264
    %v303 = vsel %vm301, %v292, 0
    %305 = vmatprep.subr.mxu0 0.0
    %306 = vmatpush1.msra.mxu0 %v293
    %307 = vmatprep.subr.mxu0 0.0
    %308 = vmatpush1.msra.mxu0 %v294
    %309 = vmatprep.subr.mxu0 0.0
    %310 = vmatpush1.msra.mxu0 %v295
    %311 = vmatprep.subr.mxu0 0.0
    %312 = vmatpush1.msra.mxu0 %v296
    %313 = vmatprep.subr.mxu0 0.0
    %314 = vmatpush1.msra.mxu0 %v297
    %315 = vmatprep.subr.mxu0 0.0
    %316 = vmatpush1.msra.mxu0 %v298
    %317 = vmatprep.subr.mxu0 0.0
    %318 = vmatpush1.msra.mxu0 %v299
    %319 = vmatprep.subr.mxu0 0.0
    %320 = vmatpush1.msra.mxu0 %v300
    %321 = vmatprep.subr.mxu0 0.0
    %322 = vmatpush1.msra.mxu0 0.0
    %323 = vmatprep.subr.mxu0 0.0
    %324 = vmatpush1.msra.mxu0 0.0
    %325 = vmatprep.subr.mxu0 0.0
    %326 = vmatpush1.msra.mxu0 0.0
    %327 = vmatprep.subr.mxu0 0.0
    %328 = vmatpush1.msra.mxu0 0.0
    %329 = vmatprep.subr.mxu0 0.0
    %330 = vmatpush1.msra.mxu0 0.0
    %331 = vmatprep.subr.mxu0 0.0
    %332 = vmatpush1.msra.mxu0 0.0
    %333 = vmatprep.subr.mxu0 0.0
    %334 = vmatpush1.msra.mxu0 0.0
    %335 = vmatprep.subr.mxu0 0.0
    %336 = vmatpush1.msra.mxu0 0.0
    %337 = vmatprep.subr.mxu0 0.0
    %338 = vmatpush1.msra.mxu0 0.0
    %339 = vmatprep.subr.mxu0 0.0
    %340 = vmatpush1.msra.mxu0 0.0
    %341 = vmatprep.subr.mxu0 0.0
    %342 = vmatpush1.msra.mxu0 0.0
    %343 = vmatprep.subr.mxu0 0.0
    %344 = vmatpush1.msra.mxu0 0.0
    %345 = vmatprep.subr.mxu0 0.0
    %346 = vmatpush1.msra.mxu0 0.0
    %347 = vmatprep.subr.mxu0 0.0
    %348 = vmatpush1.msra.mxu0 0.0
    %349 = vmatprep.subr.mxu0 0.0
    %350 = vmatpush1.msra.mxu0 0.0
    %351 = vmatprep.subr.mxu0 0.0
    %352 = vmatpush1.msra.mxu0 0.0
    %353 = vmatprep.subr.mxu0 0.0
    %354 = vmatpush1.msra.mxu0 0.0
    %355 = vmatprep.subr.mxu0 0.0
    %356 = vmatpush1.msra.mxu0 0.0
    %357 = vmatprep.subr.mxu0 0.0
    %358 = vmatpush1.msra.mxu0 0.0
    %359 = vmatprep.subr.mxu0 0.0
    %360 = vmatpush1.msra.mxu0 0.0
    %361 = vmatprep.subr.mxu0 0.0
    %362 = vmatpush1.msra.mxu0 0.0
    %363 = vmatprep.subr.mxu0 0.0
    %364 = vmatpush1.msra.mxu0 0.0
    %365 = vmatprep.subr.mxu0 0.0
    %366 = vmatpush1.msra.mxu0 0.0
    %367 = vmatprep.subr.mxu0 0.0
    %368 = vmatpush1.msra.mxu0 0.0
    %369 = vmatprep.mubr.f32.mxu0 0.0
    %370 = vmatmul.mubr.f32.gmra.mrb[0].mxu0 %v303
    %v371 = vpop.f32.mrb[0].mxu0
    %v372 = vadd.f32 %v33, %v371
    %v373 = vpop.f32.mrb[0].mxu0
    %374 = vdwg.mxu0
    %v376 = vsel %vm64, %v372, 0
    %378 = vmatprep.subr.mxu0 0.0
    %379 = vmatpush1.msra.mxu0 %v15
    %380 = vmatprep.subr.mxu0 0.0
    %381 = vmatpush1.msra.mxu0 %v16
    %382 = vmatprep.subr.mxu0 0.0
    %383 = vmatpush1.msra.mxu0 %v17
    %384 = vmatprep.subr.mxu0 0.0
    %385 = vmatpush1.msra.mxu0 %v18
    %386 = vmatprep.subr.mxu0 0.0
    %387 = vmatpush1.msra.mxu0 0.0
    %388 = vmatprep.subr.mxu0 0.0
    %389 = vmatpush1.msra.mxu0 0.0
    %390 = vmatprep.subr.mxu0 0.0
    %391 = vmatpush1.msra.mxu0 0.0
    %392 = vmatprep.subr.mxu0 0.0
    %393 = vmatpush1.msra.mxu0 0.0
    %394 = vmatprep.subr.mxu0 0.0
    %395 = vmatpush1.msra.mxu0 0.0
    %396 = vmatprep.subr.mxu0 0.0
    %397 = vmatpush1.msra.mxu0 0.0
    %398 = vmatprep.subr.mxu0 0.0
    %399 = vmatpush1.msra.mxu0 0.0
    %400 = vmatprep.subr.mxu0 0.0
    %401 = vmatpush1.msra.mxu0 0.0
    %402 = vmatprep.subr.mxu0 0.0
    %403 = vmatpush1.msra.mxu0 0.0
    %404 = vmatprep.subr.mxu0 0.0
    %405 = vmatpush1.msra.mxu0 0.0
    %406 = vmatprep.subr.mxu0 0.0
    %407 = vmatpush1.msra.mxu0 0.0
    %408 = vmatprep.subr.mxu0 0.0
    %409 = vmatpush1.msra.mxu0 0.0
    %410 = vmatprep.subr.mxu0 0.0
    %411 = vmatpush1.msra.mxu0 0.0
    %412 = vmatprep.subr.mxu0 0.0
    %413 = vmatpush1.msra.mxu0 0.0
    %414 = vmatprep.subr.mxu0 0.0
    %415 = vmatpush1.msra.mxu0 0.0
    %416 = vmatprep.subr.mxu0 0.0
    %417 = vmatpush1.msra.mxu0 0.0
    %418 = vmatprep.subr.mxu0 0.0
    %419 = vmatpush1.msra.mxu0 0.0
    %420 = vmatprep.subr.mxu0 0.0
    %421 = vmatpush1.msra.mxu0 0.0
    %422 = vmatprep.subr.mxu0 0.0
    %423 = vmatpush1.msra.mxu0 0.0
    %424 = vmatprep.subr.mxu0 0.0
    %425 = vmatpush1.msra.mxu0 0.0
    %426 = vmatprep.subr.mxu0 0.0
    %427 = vmatpush1.msra.mxu0 0.0
    %428 = vmatprep.subr.mxu0 0.0
    %429 = vmatpush1.msra.mxu0 0.0
    %430 = vmatprep.subr.mxu0 0.0
    %431 = vmatpush1.msra.mxu0 0.0
    %432 = vmatprep.subr.mxu0 0.0
    %433 = vmatpush1.msra.mxu0 0.0
    %434 = vmatprep.subr.mxu0 0.0
    %435 = vmatpush1.msra.mxu0 0.0
    %436 = vmatprep.subr.mxu0 0.0
    %437 = vmatpush1.msra.mxu0 0.0
    %438 = vmatprep.subr.mxu0 0.0
    %439 = vmatpush1.msra.mxu0 0.0
    %440 = vmatprep.subr.mxu0 0.0
    %441 = vmatpush1.msra.mxu0 0.0
    %442 = vmatprep.mubr.f32.mxu0 0.0
    %443 = vmatmul.mubr.f32.gmra.mrb[0].mxu0 %v376
    %v444 = vpop.f32.mrb[0].mxu0
    %v445 = vadd.f32 %v28, %v444
    %v446 = vpop.f32.mrb[0].mxu0
    %447 = vdwg.mxu0
    %v448 = vmax.f32 %v445, 0.0
    %v450 = vsel %vm64, %v448, 0
    %452 = vmatprep.subr.mxu0 0.0
    %453 = vmatpush1.msra.mxu0 %v15
    %454 = vmatprep.subr.mxu0 0.0
    %455 = vmatpush1.msra.mxu0 %v16
    %456 = vmatprep.subr.mxu0 0.0
    %457 = vmatpush1.msra.mxu0 %v17
    %458 = vmatprep.subr.mxu0 0.0
    %459 = vmatpush1.msra.mxu0 %v18
    %460 = vmatprep.subr.mxu0 0.0
    %461 = vmatpush1.msra.mxu0 0.0
    %462 = vmatprep.subr.mxu0 0.0
    %463 = vmatpush1.msra.mxu0 0.0
    %464 = vmatprep.subr.mxu0 0.0
    %465 = vmatpush1.msra.mxu0 0.0
    %466 = vmatprep.subr.mxu0 0.0
    %467 = vmatpush1.msra.mxu0 0.0
    %468 = vmatprep.subr.mxu0 0.0
    %469 = vmatpush1.msra.mxu0 0.0
    %470 = vmatprep.subr.mxu0 0.0
    %471 = vmatpush1.msra.mxu0 0.0
    %472 = vmatprep.subr.mxu0 0.0
    %473 = vmatpush1.msra.mxu0 0.0
    %474 = vmatprep.subr.mxu0 0.0
    %475 = vmatpush1.msra.mxu0 0.0
    %476 = vmatprep.subr.mxu0 0.0
    %477 = vmatpush1.msra.mxu0 0.0
    %478 = vmatprep.subr.mxu0 0.0
    %479 = vmatpush1.msra.mxu0 0.0
    %480 = vmatprep.subr.mxu0 0.0
    %481 = vmatpush1.msra.mxu0 0.0
    %482 = vmatprep.subr.mxu0 0.0
    %483 = vmatpush1.msra.mxu0 0.0
    %484 = vmatprep.subr.mxu0 0.0
    %485 = vmatpush1.msra.mxu0 0.0
    %486 = vmatprep.subr.mxu0 0.0
    %487 = vmatpush1.msra.mxu0 0.0
    %488 = vmatprep.subr.mxu0 0.0
    %489 = vmatpush1.msra.mxu0 0.0
    %490 = vmatprep.subr.mxu0 0.0
    %491 = vmatpush1.msra.mxu0 0.0
    %492 = vmatprep.subr.mxu0 0.0
    %493 = vmatpush1.msra.mxu0 0.0
    %494 = vmatprep.subr.mxu0 0.0
    %495 = vmatpush1.msra.mxu0 0.0
    %496 = vmatprep.subr.mxu0 0.0
    %497 = vmatpush1.msra.mxu0 0.0
    %498 = vmatprep.subr.mxu0 0.0
    %499 = vmatpush1.msra.mxu0 0.0
    %500 = vmatprep.subr.mxu0 0.0
    %501 = vmatpush1.msra.mxu0 0.0
    %502 = vmatprep.subr.mxu0 0.0
    %503 = vmatpush1.msra.mxu0 0.0
    %504 = vmatprep.subr.mxu0 0.0
    %505 = vmatpush1.msra.mxu0 0.0
    %506 = vmatprep.subr.mxu0 0.0
    %507 = vmatpush1.msra.mxu0 0.0
    %508 = vmatprep.subr.mxu0 0.0
    %509 = vmatpush1.msra.mxu0 0.0
    %510 = vmatprep.subr.mxu0 0.0
    %511 = vmatpush1.msra.mxu0 0.0
    %512 = vmatprep.subr.mxu0 0.0
    %513 = vmatpush1.msra.mxu0 0.0
    %514 = vmatprep.subr.mxu0 0.0
    %515 = vmatpush1.msra.mxu0 0.0
    %516 = vmatprep.mubr.f32.mxu0 0.0
    %517 = vmatmul.mubr.f32.gmra.mrb[0].mxu0 %v450
    %v518 = vpop.f32.mrb[0].mxu0
    %v519 = vadd.f32 %v28, %v518
    %v520 = vpop.f32.mrb[0].mxu0
    %521 = vdwg.mxu0
    %523 = vrot.lane.b32.xlu0 %v519, 64
    %v524 = vpop.permute.xlu0 %523
    %vm526 = vcmask 785920
    %527 = vst.msk [vmem:[#allocation2] sm:$0xff] %vm526, %v524
    %v528 = vld [vmem:[#allocation2] sm:$0xff]
    %v529 = vld [vmem:[%s1 + $0x80] sm:$0xff]
    %v530 = vld [vmem:[%s1 + $0x88] sm:$0xff]
    %v531 = vld [vmem:[%s1 + $0x90] sm:$0xff]
    %v532 = vld [vmem:[%s1 + $0x98] sm:$0xff]
    %v533 = vld [vmem:[%s1 + $0xa0] sm:$0xff]
    %v534 = vld [vmem:[%s1 + $0xa8] sm:$0xff]
    %v535 = vld [vmem:[%s1 + $0xb0] sm:$0xff]
    %v536 = vld [vmem:[%s1 + $0xb8] sm:$0xff]
    %v537 = vld [vmem:[%s1 + $0xc0] sm:$0xff]
    %v538 = vld [vmem:[%s1 + $0xc8] sm:$0xff]
    %v539 = vld [vmem:[%s1 + $0xd0] sm:$0xff]
    %v540 = vld [vmem:[%s1 + $0xd8] sm:$0xff]
    %vm541 = vcmask 785408
    %v543 = vsel %vm541, %v528, 0
    %545 = vmatprep.subr.mxu0 0.0
    %546 = vmatpush1.msra.mxu0 %v529
    %547 = vmatprep.subr.mxu0 0.0
    %548 = vmatpush1.msra.mxu0 %v530
    %549 = vmatprep.subr.mxu0 0.0
    %550 = vmatpush1.msra.mxu0 %v531
    %551 = vmatprep.subr.mxu0 0.0
    %552 = vmatpush1.msra.mxu0 %v532
    %553 = vmatprep.subr.mxu0 0.0
    %554 = vmatpush1.msra.mxu0 %v533
    %555 = vmatprep.subr.mxu0 0.0
    %556 = vmatpush1.msra.mxu0 %v534
    %557 = vmatprep.subr.mxu0 0.0
    %558 = vmatpush1.msra.mxu0 %v535
    %559 = vmatprep.subr.mxu0 0.0
    %560 = vmatpush1.msra.mxu0 %v536
    %561 = vmatprep.subr.mxu0 0.0
    %562 = vmatpush1.msra.mxu0 %v537
    %563 = vmatprep.subr.mxu0 0.0
    %564 = vmatpush1.msra.mxu0 %v538
    %565 = vmatprep.subr.mxu0 0.0
    %566 = vmatpush1.msra.mxu0 %v539
    %567 = vmatprep.subr.mxu0 0.0
    %568 = vmatpush1.msra.mxu0 %v540
    %569 = vmatprep.subr.mxu0 0.0
    %570 = vmatpush1.msra.mxu0 0.0
    %571 = vmatprep.subr.mxu0 0.0
    %572 = vmatpush1.msra.mxu0 0.0
    %573 = vmatprep.subr.mxu0 0.0
    %574 = vmatpush1.msra.mxu0 0.0
    %575 = vmatprep.subr.mxu0 0.0
    %576 = vmatpush1.msra.mxu0 0.0
    %577 = vmatprep.subr.mxu0 0.0
    %578 = vmatpush1.msra.mxu0 0.0
    %579 = vmatprep.subr.mxu0 0.0
    %580 = vmatpush1.msra.mxu0 0.0
    %581 = vmatprep.subr.mxu0 0.0
    %582 = vmatpush1.msra.mxu0 0.0
    %583 = vmatprep.subr.mxu0 0.0
    %584 = vmatpush1.msra.mxu0 0.0
    %585 = vmatprep.subr.mxu0 0.0
    %586 = vmatpush1.msra.mxu0 0.0
    %587 = vmatprep.subr.mxu0 0.0
    %588 = vmatpush1.msra.mxu0 0.0
    %589 = vmatprep.subr.mxu0 0.0
    %590 = vmatpush1.msra.mxu0 0.0
    %591 = vmatprep.subr.mxu0 0.0
    %592 = vmatpush1.msra.mxu0 0.0
    %593 = vmatprep.subr.mxu0 0.0
    %594 = vmatpush1.msra.mxu0 0.0
    %595 = vmatprep.subr.mxu0 0.0
    %596 = vmatpush1.msra.mxu0 0.0
    %597 = vmatprep.subr.mxu0 0.0
    %598 = vmatpush1.msra.mxu0 0.0
    %599 = vmatprep.subr.mxu0 0.0
    %600 = vmatpush1.msra.mxu0 0.0
    %601 = vmatprep.subr.mxu0 0.0
    %602 = vmatpush1.msra.mxu0 0.0
    %603 = vmatprep.subr.mxu0 0.0
    %604 = vmatpush1.msra.mxu0 0.0
    %605 = vmatprep.subr.mxu0 0.0
    %606 = vmatpush1.msra.mxu0 0.0
    %607 = vmatprep.subr.mxu0 0.0
    %608 = vmatpush1.msra.mxu0 0.0
    %609 = vmatprep.mubr.f32.mxu0 0.0
    %610 = vmatmul.mubr.f32.gmra.mrb[0].mxu0 %v543
    %v611 = vpop.f32.mrb[0].mxu0
    %v612 = vadd.f32 %v38, %v611
    %v613 = vpop.f32.mrb[0].mxu0
    %614 = vdwg.mxu0
    %v616 = vsel %vm64, %v612, 0
    %618 = vmatprep.subr.mxu0 0.0
    %619 = vmatpush1.msra.mxu0 %v15
    %620 = vmatprep.subr.mxu0 0.0
    %621 = vmatpush1.msra.mxu0 %v16
    %622 = vmatprep.subr.mxu0 0.0
    %623 = vmatpush1.msra.mxu0 %v17
    %624 = vmatprep.subr.mxu0 0.0
    %625 = vmatpush1.msra.mxu0 %v18
    %626 = vmatprep.subr.mxu0 0.0
    %627 = vmatpush1.msra.mxu0 0.0
    %628 = vmatprep.subr.mxu0 0.0
    %629 = vmatpush1.msra.mxu0 0.0
    %630 = vmatprep.subr.mxu0 0.0
    %631 = vmatpush1.msra.mxu0 0.0
    %632 = vmatprep.subr.mxu0 0.0
    %633 = vmatpush1.msra.mxu0 0.0
    %634 = vmatprep.subr.mxu0 0.0
    %635 = vmatpush1.msra.mxu0 0.0
    %636 = vmatprep.subr.mxu0 0.0
    %637 = vmatpush1.msra.mxu0 0.0
    %638 = vmatprep.subr.mxu0 0.0
    %639 = vmatpush1.msra.mxu0 0.0
    %640 = vmatprep.subr.mxu0 0.0
    %641 = vmatpush1.msra.mxu0 0.0
    %642 = vmatprep.subr.mxu0 0.0
    %643 = vmatpush1.msra.mxu0 0.0
    %644 = vmatprep.subr.mxu0 0.0
    %645 = vmatpush1.msra.mxu0 0.0
    %646 = vmatprep.subr.mxu0 0.0
    %647 = vmatpush1.msra.mxu0 0.0
    %648 = vmatprep.subr.mxu0 0.0
    %649 = vmatpush1.msra.mxu0 0.0
    %650 = vmatprep.subr.mxu0 0.0
    %651 = vmatpush1.msra.mxu0 0.0
    %652 = vmatprep.subr.mxu0 0.0
    %653 = vmatpush1.msra.mxu0 0.0
    %654 = vmatprep.subr.mxu0 0.0
    %655 = vmatpush1.msra.mxu0 0.0
    %656 = vmatprep.subr.mxu0 0.0
    %657 = vmatpush1.msra.mxu0 0.0
    %658 = vmatprep.subr.mxu0 0.0
    %659 = vmatpush1.msra.mxu0 0.0
    %660 = vmatprep.subr.mxu0 0.0
    %661 = vmatpush1.msra.mxu0 0.0
    %662 = vmatprep.subr.mxu0 0.0
    %663 = vmatpush1.msra.mxu0 0.0
    %664 = vmatprep.subr.mxu0 0.0
    %665 = vmatpush1.msra.mxu0 0.0
    %666 = vmatprep.subr.mxu0 0.0
    %667 = vmatpush1.msra.mxu0 0.0
    %668 = vmatprep.subr.mxu0 0.0
    %669 = vmatpush1.msra.mxu0 0.0
    %670 = vmatprep.subr.mxu0 0.0
    %671 = vmatpush1.msra.mxu0 0.0
    %672 = vmatprep.subr.mxu0 0.0
    %673 = vmatpush1.msra.mxu0 0.0
    %674 = vmatprep.subr.mxu0 0.0
    %675 = vmatpush1.msra.mxu0 0.0
    %676 = vmatprep.subr.mxu0 0.0
    %677 = vmatpush1.msra.mxu0 0.0
    %678 = vmatprep.subr.mxu0 0.0
    %679 = vmatpush1.msra.mxu0 0.0
    %680 = vmatprep.subr.mxu0 0.0
    %681 = vmatpush1.msra.mxu0 0.0
    %682 = vmatprep.mubr.f32.mxu0 0.0
    %683 = vmatmul.mubr.f32.gmra.mrb[0].mxu0 %v616
    %v684 = vpop.f32.mrb[0].mxu0
    %v685 = vadd.f32 %v28, %v684
    %v686 = vpop.f32.mrb[0].mxu0
    %687 = vdwg.mxu0
    %v688 = vmax.f32 %v685, 0.0
    %v690 = vsel %vm64, %v688, 0
    %692 = vmatprep.subr.mxu0 0.0
    %693 = vmatpush1.msra.mxu0 %v15
    %694 = vmatprep.subr.mxu0 0.0
    %695 = vmatpush1.msra.mxu0 %v16
    %696 = vmatprep.subr.mxu0 0.0
    %697 = vmatpush1.msra.mxu0 %v17
    %698 = vmatprep.subr.mxu0 0.0
    %699 = vmatpush1.msra.mxu0 %v18
    %700 = vmatprep.subr.mxu0 0.0
    %701 = vmatpush1.msra.mxu0 0.0
    %702 = vmatprep.subr.mxu0 0.0
    %703 = vmatpush1.msra.mxu0 0.0
    %704 = vmatprep.subr.mxu0 0.0
    %705 = vmatpush1.msra.mxu0 0.0
    %706 = vmatprep.subr.mxu0 0.0
    %707 = vmatpush1.msra.mxu0 0.0
    %708 = vmatprep.subr.mxu0 0.0
    %709 = vmatpush1.msra.mxu0 0.0
    %710 = vmatprep.subr.mxu0 0.0
    %711 = vmatpush1.msra.mxu0 0.0
    %712 = vmatprep.subr.mxu0 0.0
    %713 = vmatpush1.msra.mxu0 0.0
    %714 = vmatprep.subr.mxu0 0.0
    %715 = vmatpush1.msra.mxu0 0.0
    %716 = vmatprep.subr.mxu0 0.0
    %717 = vmatpush1.msra.mxu0 0.0
    %718 = vmatprep.subr.mxu0 0.0
    %719 = vmatpush1.msra.mxu0 0.0
    %720 = vmatprep.subr.mxu0 0.0
    %721 = vmatpush1.msra.mxu0 0.0
    %722 = vmatprep.subr.mxu0 0.0
    %723 = vmatpush1.msra.mxu0 0.0
    %724 = vmatprep.subr.mxu0 0.0
    %725 = vmatpush1.msra.mxu0 0.0
    %726 = vmatprep.subr.mxu0 0.0
    %727 = vmatpush1.msra.mxu0 0.0
    %728 = vmatprep.subr.mxu0 0.0
    %729 = vmatpush1.msra.mxu0 0.0
    %730 = vmatprep.subr.mxu0 0.0
    %731 = vmatpush1.msra.mxu0 0.0
    %732 = vmatprep.subr.mxu0 0.0
    %733 = vmatpush1.msra.mxu0 0.0
    %734 = vmatprep.subr.mxu0 0.0
    %735 = vmatpush1.msra.mxu0 0.0
    %736 = vmatprep.subr.mxu0 0.0
    %737 = vmatpush1.msra.mxu0 0.0
    %738 = vmatprep.subr.mxu0 0.0
    %739 = vmatpush1.msra.mxu0 0.0
    %740 = vmatprep.subr.mxu0 0.0
    %741 = vmatpush1.msra.mxu0 0.0
    %742 = vmatprep.subr.mxu0 0.0
    %743 = vmatpush1.msra.mxu0 0.0
    %744 = vmatprep.subr.mxu0 0.0
    %745 = vmatpush1.msra.mxu0 0.0
    %746 = vmatprep.subr.mxu0 0.0
    %747 = vmatpush1.msra.mxu0 0.0
    %748 = vmatprep.subr.mxu0 0.0
    %749 = vmatpush1.msra.mxu0 0.0
    %750 = vmatprep.subr.mxu0 0.0
    %751 = vmatpush1.msra.mxu0 0.0
    %752 = vmatprep.subr.mxu0 0.0
    %753 = vmatpush1.msra.mxu0 0.0
    %754 = vmatprep.subr.mxu0 0.0
    %755 = vmatpush1.msra.mxu0 0.0
    %756 = vmatprep.mubr.f32.mxu0 0.0
    %757 = vmatmul.mubr.f32.gmra.mrb[0].mxu0 %v690
    %v758 = vpop.f32.mrb[0].mxu0
    %v759 = vadd.f32 %v28, %v758
    %v760 = vpop.f32.mrb[0].mxu0
    %761 = vdwg.mxu0
    %763 = vrot.lane.b32.xlu0 %v759, 96
    %v764 = vpop.permute.xlu0 %763
    %vm766 = vcmask 1048320
    %767 = vst.msk [vmem:[#allocation2] sm:$0xff] %vm766, %v764
    %v768 = vld [vmem:[#allocation2] sm:$0xff]
    %v769 = vld [vmem:[%s1 + $0xe0] sm:$0xff]
    %v770 = vld [vmem:[%s1 + $0xe8] sm:$0xff]
    %v771 = vld [vmem:[%s1 + $0xf0] sm:$0xff]
    %v772 = vld [vmem:[%s1 + $0xf8] sm:$0xff]
    %v773 = vld [vmem:[%s1 + $0x100] sm:$0xff]
    %v774 = vld [vmem:[%s1 + $0x108] sm:$0xff]
    %v775 = vld [vmem:[%s1 + $0x110] sm:$0xff]
    %v776 = vld [vmem:[%s1 + $0x118] sm:$0xff]
    %v777 = vld [vmem:[%s1 + $0x120] sm:$0xff]
    %v778 = vld [vmem:[%s1 + $0x128] sm:$0xff]
    %v779 = vld [vmem:[%s1 + $0x130] sm:$0xff]
    %v780 = vld [vmem:[%s1 + $0x138] sm:$0xff]
    %v781 = vld [vmem:[%s1 + $0x140] sm:$0xff]
    %v782 = vld [vmem:[%s1 + $0x148] sm:$0xff]
    %v783 = vld [vmem:[%s1 + $0x150] sm:$0xff]
    %v784 = vld [vmem:[%s1 + $0x158] sm:$0xff]
    %785 = vmatprep.subr.mxu0 0.0
    %786 = vmatpush1.msra.mxu0 %v769
    %787 = vmatprep.subr.mxu0 0.0
    %788 = vmatpush1.msra.mxu0 %v770
    %789 = vmatprep.subr.mxu0 0.0
    %790 = vmatpush1.msra.mxu0 %v771
    %791 = vmatprep.subr.mxu0 0.0
    %792 = vmatpush1.msra.mxu0 %v772
    %793 = vmatprep.subr.mxu0 0.0
    %794 = vmatpush1.msra.mxu0 %v773
    %795 = vmatprep.subr.mxu0 0.0
    %796 = vmatpush1.msra.mxu0 %v774
    %797 = vmatprep.subr.mxu0 0.0
    %798 = vmatpush1.msra.mxu0 %v775
    %799 = vmatprep.subr.mxu0 0.0
    %800 = vmatpush1.msra.mxu0 %v776
    %801 = vmatprep.subr.mxu0 0.0
    %802 = vmatpush1.msra.mxu0 %v777
    %803 = vmatprep.subr.mxu0 0.0
    %804 = vmatpush1.msra.mxu0 %v778
    %805 = vmatprep.subr.mxu0 0.0
    %806 = vmatpush1.msra.mxu0 %v779
    %807 = vmatprep.subr.mxu0 0.0
    %808 = vmatpush1.msra.mxu0 %v780
    %809 = vmatprep.subr.mxu0 0.0
    %810 = vmatpush1.msra.mxu0 %v781
    %811 = vmatprep.subr.mxu0 0.0
    %812 = vmatpush1.msra.mxu0 %v782
    %813 = vmatprep.subr.mxu0 0.0
    %814 = vmatpush1.msra.mxu0 %v783
    %815 = vmatprep.subr.mxu0 0.0
    %816 = vmatpush1.msra.mxu0 %v784
    %817 = vmatprep.subr.mxu0 0.0
    %818 = vmatpush1.msra.mxu0 0.0
    %819 = vmatprep.subr.mxu0 0.0
    %820 = vmatpush1.msra.mxu0 0.0
    %821 = vmatprep.subr.mxu0 0.0
    %822 = vmatpush1.msra.mxu0 0.0
    %823 = vmatprep.subr.mxu0 0.0
    %824 = vmatpush1.msra.mxu0 0.0
    %825 = vmatprep.subr.mxu0 0.0
    %826 = vmatpush1.msra.mxu0 0.0
    %827 = vmatprep.subr.mxu0 0.0
    %828 = vmatpush1.msra.mxu0 0.0
    %829 = vmatprep.subr.mxu0 0.0
    %830 = vmatpush1.msra.mxu0 0.0
    %831 = vmatprep.subr.mxu0 0.0
    %832 = vmatpush1.msra.mxu0 0.0
    %833 = vmatprep.subr.mxu0 0.0
    %834 = vmatpush1.msra.mxu0 0.0
    %835 = vmatprep.subr.mxu0 0.0
    %836 = vmatpush1.msra.mxu0 0.0
    %837 = vmatprep.subr.mxu0 0.0
    %838 = vmatpush1.msra.mxu0 0.0
    %839 = vmatprep.subr.mxu0 0.0
    %840 = vmatpush1.msra.mxu0 0.0
    %841 = vmatprep.subr.mxu0 0.0
    %842 = vmatpush1.msra.mxu0 0.0
    %843 = vmatprep.subr.mxu0 0.0
    %844 = vmatpush1.msra.mxu0 0.0
    %845 = vmatprep.subr.mxu0 0.0
    %846 = vmatpush1.msra.mxu0 0.0
    %847 = vmatprep.subr.mxu0 0.0
    %848 = vmatpush1.msra.mxu0 0.0
    %849 = vmatprep.mubr.f32.mxu0 0.0
    %850 = vmatmul.mubr.f32.gmra.mrb[0].mxu0 %v768
    %v851 = vpop.f32.mrb[0].mxu0
    %v852 = vadd.f32 %v43, %v851
    %v853 = vpop.f32.mrb[0].mxu0
    %854 = vdwg.mxu0
    %v856 = vsel %vm64, %v852, 0
    %858 = vmatprep.subr.mxu0 0.0
    %859 = vmatpush1.msra.mxu0 %v15
    %860 = vmatprep.subr.mxu0 0.0
    %861 = vmatpush1.msra.mxu0 %v16
    %862 = vmatprep.subr.mxu0 0.0
    %863 = vmatpush1.msra.mxu0 %v17
    %864 = vmatprep.subr.mxu0 0.0
    %865 = vmatpush1.msra.mxu0 %v18
    %866 = vmatprep.subr.mxu0 0.0
    %867 = vmatpush1.msra.mxu0 0.0
    %868 = vmatprep.subr.mxu0 0.0
    %869 = vmatpush1.msra.mxu0 0.0
    %870 = vmatprep.subr.mxu0 0.0
    %871 = vmatpush1.msra.mxu0 0.0
    %872 = vmatprep.subr.mxu0 0.0
    %873 = vmatpush1.msra.mxu0 0.0
    %874 = vmatprep.subr.mxu0 0.0
    %875 = vmatpush1.msra.mxu0 0.0
    %876 = vmatprep.subr.mxu0 0.0
    %877 = vmatpush1.msra.mxu0 0.0
    %878 = vmatprep.subr.mxu0 0.0
    %879 = vmatpush1.msra.mxu0 0.0
    %880 = vmatprep.subr.mxu0 0.0
    %881 = vmatpush1.msra.mxu0 0.0
    %882 = vmatprep.subr.mxu0 0.0
    %883 = vmatpush1.msra.mxu0 0.0
    %884 = vmatprep.subr.mxu0 0.0
    %885 = vmatpush1.msra.mxu0 0.0
    %886 = vmatprep.subr.mxu0 0.0
    %887 = vmatpush1.msra.mxu0 0.0
    %888 = vmatprep.subr.mxu0 0.0
    %889 = vmatpush1.msra.mxu0 0.0
    %890 = vmatprep.subr.mxu0 0.0
    %891 = vmatpush1.msra.mxu0 0.0
    %892 = vmatprep.subr.mxu0 0.0
    %893 = vmatpush1.msra.mxu0 0.0
    %894 = vmatprep.subr.mxu0 0.0
    %895 = vmatpush1.msra.mxu0 0.0
    %896 = vmatprep.subr.mxu0 0.0
    %897 = vmatpush1.msra.mxu0 0.0
    %898 = vmatprep.subr.mxu0 0.0
    %899 = vmatpush1.msra.mxu0 0.0
    %900 = vmatprep.subr.mxu0 0.0
    %901 = vmatpush1.msra.mxu0 0.0
    %902 = vmatprep.subr.mxu0 0.0
    %903 = vmatpush1.msra.mxu0 0.0
    %904 = vmatprep.subr.mxu0 0.0
    %905 = vmatpush1.msra.mxu0 0.0
    %906 = vmatprep.subr.mxu0 0.0
    %907 = vmatpush1.msra.mxu0 0.0
    %908 = vmatprep.subr.mxu0 0.0
    %909 = vmatpush1.msra.mxu0 0.0
    %910 = vmatprep.subr.mxu0 0.0
    %911 = vmatpush1.msra.mxu0 0.0
    %912 = vmatprep.subr.mxu0 0.0
    %913 = vmatpush1.msra.mxu0 0.0
    %914 = vmatprep.subr.mxu0 0.0
    %915 = vmatpush1.msra.mxu0 0.0
    %916 = vmatprep.subr.mxu0 0.0
    %917 = vmatpush1.msra.mxu0 0.0
    %918 = vmatprep.subr.mxu0 0.0
    %919 = vmatpush1.msra.mxu0 0.0
    %920 = vmatprep.subr.mxu0 0.0
    %921 = vmatpush1.msra.mxu0 0.0
    %922 = vmatprep.mubr.f32.mxu0 0.0
    %923 = vmatmul.mubr.f32.gmra.mrb[0].mxu0 %v856
    %v924 = vpop.f32.mrb[0].mxu0
    %v925 = vadd.f32 %v28, %v924
    %v926 = vpop.f32.mrb[0].mxu0
    %927 = vdwg.mxu0
    %v928 = vmax.f32 %v925, 0.0
    %v930 = vsel %vm64, %v928, 0
    %932 = vmatprep.subr.mxu0 0.0
    %933 = vmatpush1.msra.mxu0 %v15
    %934 = vmatprep.subr.mxu0 0.0
    %935 = vmatpush1.msra.mxu0 %v16
    %936 = vmatprep.subr.mxu0 0.0
    %937 = vmatpush1.msra.mxu0 %v17
    %938 = vmatprep.subr.mxu0 0.0
    %939 = vmatpush1.msra.mxu0 %v18
    %940 = vmatprep.subr.mxu0 0.0
    %941 = vmatpush1.msra.mxu0 0.0
    %942 = vmatprep.subr.mxu0 0.0
    %943 = vmatpush1.msra.mxu0 0.0
    %944 = vmatprep.subr.mxu0 0.0
    %945 = vmatpush1.msra.mxu0 0.0
    %946 = vmatprep.subr.mxu0 0.0
    %947 = vmatpush1.msra.mxu0 0.0
    %948 = vmatprep.subr.mxu0 0.0
    %949 = vmatpush1.msra.mxu0 0.0
    %950 = vmatprep.subr.mxu0 0.0
    %951 = vmatpush1.msra.mxu0 0.0
    %952 = vmatprep.subr.mxu0 0.0
    %953 = vmatpush1.msra.mxu0 0.0
    %954 = vmatprep.subr.mxu0 0.0
    %955 = vmatpush1.msra.mxu0 0.0
    %956 = vmatprep.subr.mxu0 0.0
    %957 = vmatpush1.msra.mxu0 0.0
    %958 = vmatprep.subr.mxu0 0.0
    %959 = vmatpush1.msra.mxu0 0.0
    %960 = vmatprep.subr.mxu0 0.0
    %961 = vmatpush1.msra.mxu0 0.0
    %962 = vmatprep.subr.mxu0 0.0
    %963 = vmatpush1.msra.mxu0 0.0
    %964 = vmatprep.subr.mxu0 0.0
    %965 = vmatpush1.msra.mxu0 0.0
    %966 = vmatprep.subr.mxu0 0.0
    %967 = vmatpush1.msra.mxu0 0.0
    %968 = vmatprep.subr.mxu0 0.0
    %969 = vmatpush1.msra.mxu0 0.0
    %970 = vmatprep.subr.mxu0 0.0
    %971 = vmatpush1.msra.mxu0 0.0
    %972 = vmatprep.subr.mxu0 0.0
    %973 = vmatpush1.msra.mxu0 0.0
    %974 = vmatprep.subr.mxu0 0.0
    %975 = vmatpush1.msra.mxu0 0.0
    %976 = vmatprep.subr.mxu0 0.0
    %977 = vmatpush1.msra.mxu0 0.0
    %978 = vmatprep.subr.mxu0 0.0
    %979 = vmatpush1.msra.mxu0 0.0
    %980 = vmatprep.subr.mxu0 0.0
    %981 = vmatpush1.msra.mxu0 0.0
    %982 = vmatprep.subr.mxu0 0.0
    %983 = vmatpush1.msra.mxu0 0.0
    %984 = vmatprep.subr.mxu0 0.0
    %985 = vmatpush1.msra.mxu0 0.0
    %986 = vmatprep.subr.mxu0 0.0
    %987 = vmatpush1.msra.mxu0 0.0
    %988 = vmatprep.subr.mxu0 0.0
    %989 = vmatpush1.msra.mxu0 0.0
    %990 = vmatprep.subr.mxu0 0.0
    %991 = vmatpush1.msra.mxu0 0.0
    %992 = vmatprep.subr.mxu0 0.0
    %993 = vmatpush1.msra.mxu0 0.0
    %994 = vmatprep.subr.mxu0 0.0
    %995 = vmatpush1.msra.mxu0 0.0
    %996 = vmatprep.mubr.f32.mxu0 0.0
    %997 = vmatmul.mubr.f32.gmra.mrb[0].mxu0 %v930
    %v998 = vpop.f32.mrb[0].mxu0
    %v999 = vadd.f32 %v28, %v998
    %v1000 = vpop.f32.mrb[0].mxu0
    %1001 = vdwg.mxu0
    %1002 = vst.msk [vmem:[#allocation2 + $0x8] sm:$0xff] %vm64, %v999
    %v1003 = vld [vmem:[#allocation2] sm:$0xff]
    %v1004 = vld [vmem:[#allocation2 + $0x8] sm:$0xff]
    %v1005 = vld [vmem:[%s1 + $0x160] sm:$0xff]
    %v1006 = vld [vmem:[%s1 + $0x168] sm:$0xff]
    %v1007 = vld [vmem:[%s1 + $0x170] sm:$0xff]
    %v1008 = vld [vmem:[%s1 + $0x178] sm:$0xff]
    %v1009 = vld [vmem:[%s1 + $0x180] sm:$0xff]
    %v1010 = vld [vmem:[%s1 + $0x188] sm:$0xff]
    %v1011 = vld [vmem:[%s1 + $0x190] sm:$0xff]
    %v1012 = vld [vmem:[%s1 + $0x198] sm:$0xff]
    %v1013 = vld [vmem:[%s1 + $0x1a0] sm:$0xff]
    %v1014 = vld [vmem:[%s1 + $0x1a8] sm:$0xff]
    %v1015 = vld [vmem:[%s1 + $0x1b0] sm:$0xff]
    %v1016 = vld [vmem:[%s1 + $0x1b8] sm:$0xff]
    %v1017 = vld [vmem:[%s1 + $0x1c0] sm:$0xff]
    %v1018 = vld [vmem:[%s1 + $0x1c8] sm:$0xff]
    %v1019 = vld [vmem:[%s1 + $0x1d0] sm:$0xff]
    %v1020 = vld [vmem:[%s1 + $0x1d8] sm:$0xff]
    %v1021 = vld [vmem:[%s1 + $0x1e0] sm:$0xff]
    %v1022 = vld [vmem:[%s1 + $0x1e8] sm:$0xff]
    %v1023 = vld [vmem:[%s1 + $0x1f0] sm:$0xff]
    %v1024 = vld [vmem:[%s1 + $0x1f8] sm:$0xff]
    %v1026 = vsel %vm64, %v1004, 0
    %1028 = vmatprep.subr.mxu0 0.0
    %1029 = vmatpush1.msra.mxu0 %v1005
    %1030 = vmatprep.subr.mxu0 0.0
    %1031 = vmatpush1.msra.mxu0 %v1006
    %1032 = vmatprep.subr.mxu0 0.0
    %1033 = vmatpush1.msra.mxu0 %v1007
    %1034 = vmatprep.subr.mxu0 0.0
    %1035 = vmatpush1.msra.mxu0 %v1008
    %1036 = vmatprep.subr.mxu0 0.0
    %1037 = vmatpush1.msra.mxu0 %v1009
    %1038 = vmatprep.subr.mxu0 0.0
    %1039 = vmatpush1.msra.mxu0 %v1010
    %1040 = vmatprep.subr.mxu0 0.0
    %1041 = vmatpush1.msra.mxu0 %v1011
    %1042 = vmatprep.subr.mxu0 0.0
    %1043 = vmatpush1.msra.mxu0 %v1012
    %1044 = vmatprep.subr.mxu0 0.0
    %1045 = vmatpush1.msra.mxu0 %v1013
    %1046 = vmatprep.subr.mxu0 0.0
    %1047 = vmatpush1.msra.mxu0 %v1014
    %1048 = vmatprep.subr.mxu0 0.0
    %1049 = vmatpush1.msra.mxu0 %v1015
    %1050 = vmatprep.subr.mxu0 0.0
    %1051 = vmatpush1.msra.mxu0 %v1016
    %1052 = vmatprep.subr.mxu0 0.0
    %1053 = vmatpush1.msra.mxu0 %v1017
    %1054 = vmatprep.subr.mxu0 0.0
    %1055 = vmatpush1.msra.mxu0 %v1018
    %1056 = vmatprep.subr.mxu0 0.0
    %1057 = vmatpush1.msra.mxu0 %v1019
    %1058 = vmatprep.subr.mxu0 0.0
    %1059 = vmatpush1.msra.mxu0 %v1020
    %1060 = vmatprep.subr.mxu0 0.0
    %1061 = vmatpush1.msra.mxu0 %v1021
    %1062 = vmatprep.subr.mxu0 0.0
    %1063 = vmatpush1.msra.mxu0 %v1022
    %1064 = vmatprep.subr.mxu0 0.0
    %1065 = vmatpush1.msra.mxu0 %v1023
    %1066 = vmatprep.subr.mxu0 0.0
    %1067 = vmatpush1.msra.mxu0 %v1024
    %1068 = vmatprep.subr.mxu0 0.0
    %1069 = vmatpush1.msra.mxu0 0.0
    %1070 = vmatprep.subr.mxu0 0.0
    %1071 = vmatpush1.msra.mxu0 0.0
    %1072 = vmatprep.subr.mxu0 0.0
    %1073 = vmatpush1.msra.mxu0 0.0
    %1074 = vmatprep.subr.mxu0 0.0
    %1075 = vmatpush1.msra.mxu0 0.0
    %1076 = vmatprep.subr.mxu0 0.0
    %1077 = vmatpush1.msra.mxu0 0.0
    %1078 = vmatprep.subr.mxu0 0.0
    %1079 = vmatpush1.msra.mxu0 0.0
    %1080 = vmatprep.subr.mxu0 0.0
    %1081 = vmatpush1.msra.mxu0 0.0
    %1082 = vmatprep.subr.mxu0 0.0
    %1083 = vmatpush1.msra.mxu0 0.0
    %1084 = vmatprep.subr.mxu0 0.0
    %1085 = vmatpush1.msra.mxu0 0.0
    %1086 = vmatprep.subr.mxu0 0.0
    %1087 = vmatpush1.msra.mxu0 0.0
    %1088 = vmatprep.subr.mxu0 0.0
    %1089 = vmatpush1.msra.mxu0 0.0
    %1090 = vmatprep.subr.mxu0 0.0
    %1091 = vmatpush1.msra.mxu0 0.0
    %1092 = vmatprep.mubr.f32.mxu0 %v1026
    %1093 = vmatmul.mubr.f32.gmra.mrb[0].mxu0 %v1003
    %v1094 = vpop.f32.mrb[0].mxu0
    %v1095 = vadd.f32 %v48, %v1094
    %v1096 = vpop.f32.mrb[0].mxu0
    %1097 = vdwg.mxu0
    %v1099 = vsel %vm64, %v1095, 0
    %1101 = vmatprep.subr.mxu0 0.0
    %1102 = vmatpush1.msra.mxu0 %v15
    %1103 = vmatprep.subr.mxu0 0.0
    %1104 = vmatpush1.msra.mxu0 %v16
    %1105 = vmatprep.subr.mxu0 0.0
    %1106 = vmatpush1.msra.mxu0 %v17
    %1107 = vmatprep.subr.mxu0 0.0
    %1108 = vmatpush1.msra.mxu0 %v18
    %1109 = vmatprep.subr.mxu0 0.0
    %1110 = vmatpush1.msra.mxu0 0.0
    %1111 = vmatprep.subr.mxu0 0.0
    %1112 = vmatpush1.msra.mxu0 0.0
    %1113 = vmatprep.subr.mxu0 0.0
    %1114 = vmatpush1.msra.mxu0 0.0
    %1115 = vmatprep.subr.mxu0 0.0
    %1116 = vmatpush1.msra.mxu0 0.0
    %1117 = vmatprep.subr.mxu0 0.0
    %1118 = vmatpush1.msra.mxu0 0.0
    %1119 = vmatprep.subr.mxu0 0.0
    %1120 = vmatpush1.msra.mxu0 0.0
    %1121 = vmatprep.subr.mxu0 0.0
    %1122 = vmatpush1.msra.mxu0 0.0
    %1123 = vmatprep.subr.mxu0 0.0
    %1124 = vmatpush1.msra.mxu0 0.0
    %1125 = vmatprep.subr.mxu0 0.0
    %1126 = vmatpush1.msra.mxu0 0.0
    %1127 = vmatprep.subr.mxu0 0.0
    %1128 = vmatpush1.msra.mxu0 0.0
    %1129 = vmatprep.subr.mxu0 0.0
    %1130 = vmatpush1.msra.mxu0 0.0
    %1131 = vmatprep.subr.mxu0 0.0
    %1132 = vmatpush1.msra.mxu0 0.0
    %1133 = vmatprep.subr.mxu0 0.0
    %1134 = vmatpush1.msra.mxu0 0.0
    %1135 = vmatprep.subr.mxu0 0.0
    %1136 = vmatpush1.msra.mxu0 0.0
    %1137 = vmatprep.subr.mxu0 0.0
    %1138 = vmatpush1.msra.mxu0 0.0
    %1139 = vmatprep.subr.mxu0 0.0
    %1140 = vmatpush1.msra.mxu0 0.0
    %1141 = vmatprep.subr.mxu0 0.0
    %1142 = vmatpush1.msra.mxu0 0.0
    %1143 = vmatprep.subr.mxu0 0.0
    %1144 = vmatpush1.msra.mxu0 0.0
    %1145 = vmatprep.subr.mxu0 0.0
    %1146 = vmatpush1.msra.mxu0 0.0
    %1147 = vmatprep.subr.mxu0 0.0
    %1148 = vmatpush1.msra.mxu0 0.0
    %1149 = vmatprep.subr.mxu0 0.0
    %1150 = vmatpush1.msra.mxu0 0.0
    %1151 = vmatprep.subr.mxu0 0.0
    %1152 = vmatpush1.msra.mxu0 0.0
    %1153 = vmatprep.subr.mxu0 0.0
    %1154 = vmatpush1.msra.mxu0 0.0
    %1155 = vmatprep.subr.mxu0 0.0
    %1156 = vmatpush1.msra.mxu0 0.0
    %1157 = vmatprep.subr.mxu0 0.0
    %1158 = vmatpush1.msra.mxu0 0.0
    %1159 = vmatprep.subr.mxu0 0.0
    %1160 = vmatpush1.msra.mxu0 0.0
    %1161 = vmatprep.subr.mxu0 0.0
    %1162 = vmatpush1.msra.mxu0 0.0
    %1163 = vmatprep.subr.mxu0 0.0
    %1164 = vmatpush1.msra.mxu0 0.0
    %1165 = vmatprep.mubr.f32.mxu0 0.0
    %1166 = vmatmul.mubr.f32.gmra.mrb[0].mxu0 %v1099
    %v1167 = vpop.f32.mrb[0].mxu0
    %v1168 = vadd.f32 %v28, %v1167
    %v1169 = vpop.f32.mrb[0].mxu0
    %1170 = vdwg.mxu0
    %v1171 = vmax.f32 %v1168, 0.0
    %v1173 = vsel %vm64, %v1171, 0
    %1175 = vmatprep.subr.mxu0 0.0
    %1176 = vmatpush1.msra.mxu0 %v15
    %1177 = vmatprep.subr.mxu0 0.0
    %1178 = vmatpush1.msra.mxu0 %v16
    %1179 = vmatprep.subr.mxu0 0.0
    %1180 = vmatpush1.msra.mxu0 %v17
    %1181 = vmatprep.subr.mxu0 0.0
    %1182 = vmatpush1.msra.mxu0 %v18
    %1183 = vmatprep.subr.mxu0 0.0
    %1184 = vmatpush1.msra.mxu0 0.0
    %1185 = vmatprep.subr.mxu0 0.0
    %1186 = vmatpush1.msra.mxu0 0.0
    %1187 = vmatprep.subr.mxu0 0.0
    %1188 = vmatpush1.msra.mxu0 0.0
    %1189 = vmatprep.subr.mxu0 0.0
    %1190 = vmatpush1.msra.mxu0 0.0
    %1191 = vmatprep.subr.mxu0 0.0
    %1192 = vmatpush1.msra.mxu0 0.0
    %1193 = vmatprep.subr.mxu0 0.0
    %1194 = vmatpush1.msra.mxu0 0.0
    %1195 = vmatprep.subr.mxu0 0.0
    %1196 = vmatpush1.msra.mxu0 0.0
    %1197 = vmatprep.subr.mxu0 0.0
    %1198 = vmatpush1.msra.mxu0 0.0
    %1199 = vmatprep.subr.mxu0 0.0
    %1200 = vmatpush1.msra.mxu0 0.0
    %1201 = vmatprep.subr.mxu0 0.0
    %1202 = vmatpush1.msra.mxu0 0.0
    %1203 = vmatprep.subr.mxu0 0.0
    %1204 = vmatpush1.msra.mxu0 0.0
    %1205 = vmatprep.subr.mxu0 0.0
    %1206 = vmatpush1.msra.mxu0 0.0
    %1207 = vmatprep.subr.mxu0 0.0
    %1208 = vmatpush1.msra.mxu0 0.0
    %1209 = vmatprep.subr.mxu0 0.0
    %1210 = vmatpush1.msra.mxu0 0.0
    %1211 = vmatprep.subr.mxu0 0.0
    %1212 = vmatpush1.msra.mxu0 0.0
    %1213 = vmatprep.subr.mxu0 0.0
    %1214 = vmatpush1.msra.mxu0 0.0
    %1215 = vmatprep.subr.mxu0 0.0
    %1216 = vmatpush1.msra.mxu0 0.0
    %1217 = vmatprep.subr.mxu0 0.0
    %1218 = vmatpush1.msra.mxu0 0.0
    %1219 = vmatprep.subr.mxu0 0.0
    %1220 = vmatpush1.msra.mxu0 0.0
    %1221 = vmatprep.subr.mxu0 0.0
    %1222 = vmatpush1.msra.mxu0 0.0
    %1223 = vmatprep.subr.mxu0 0.0
    %1224 = vmatpush1.msra.mxu0 0.0
    %1225 = vmatprep.subr.mxu0 0.0
    %1226 = vmatpush1.msra.mxu0 0.0
    %1227 = vmatprep.subr.mxu0 0.0
    %1228 = vmatpush1.msra.mxu0 0.0
    %1229 = vmatprep.subr.mxu0 0.0
    %1230 = vmatpush1.msra.mxu0 0.0
    %1231 = vmatprep.subr.mxu0 0.0
    %1232 = vmatpush1.msra.mxu0 0.0
    %1233 = vmatprep.subr.mxu0 0.0
    %1234 = vmatpush1.msra.mxu0 0.0
    %1235 = vmatprep.subr.mxu0 0.0
    %1236 = vmatpush1.msra.mxu0 0.0
    %1237 = vmatprep.subr.mxu0 0.0
    %1238 = vmatpush1.msra.mxu0 0.0
    %1239 = vmatprep.mubr.f32.mxu0 0.0
    %1240 = vmatmul.mubr.f32.gmra.mrb[0].mxu0 %v1173
    %v1241 = vpop.f32.mrb[0].mxu0
    %v1242 = vadd.f32 %v28, %v1241
    %v1243 = vpop.f32.mrb[0].mxu0
    %1244 = vdwg.mxu0
    %1246 = vrot.lane.b32.xlu0 %v1242, 32
    %v1247 = vpop.permute.xlu0 %1246
    %1249 = vst.msk [vmem:[#allocation2 + $0x8] sm:$0xff] %vm290, %v1247
    %v1250 = vld [vmem:[#allocation2] sm:$0xff]
    %v1251 = vld [vmem:[#allocation2 + $0x8] sm:$0xff]
    %v1252 = vld [vmem:[%s1 + $0x200] sm:$0xff]
    %v1253 = vld [vmem:[%s1 + $0x208] sm:$0xff]
    %v1254 = vld [vmem:[%s1 + $0x210] sm:$0xff]
    %v1255 = vld [vmem:[%s1 + $0x218] sm:$0xff]
    %v1256 = vld [vmem:[%s1 + $0x220] sm:$0xff]
    %v1257 = vld [vmem:[%s1 + $0x228] sm:$0xff]
    %v1258 = vld [vmem:[%s1 + $0x230] sm:$0xff]
    %v1259 = vld [vmem:[%s1 + $0x238] sm:$0xff]
    %v1260 = vld [vmem:[%s1 + $0x240] sm:$0xff]
    %v1261 = vld [vmem:[%s1 + $0x248] sm:$0xff]
    %v1262 = vld [vmem:[%s1 + $0x250] sm:$0xff]
    %v1263 = vld [vmem:[%s1 + $0x258] sm:$0xff]
    %v1264 = vld [vmem:[%s1 + $0x260] sm:$0xff]
    %v1265 = vld [vmem:[%s1 + $0x268] sm:$0xff]
    %v1266 = vld [vmem:[%s1 + $0x270] sm:$0xff]
    %v1267 = vld [vmem:[%s1 + $0x278] sm:$0xff]
    %v1268 = vld [vmem:[%s1 + $0x280] sm:$0xff]
    %v1269 = vld [vmem:[%s1 + $0x288] sm:$0xff]
    %v1270 = vld [vmem:[%s1 + $0x290] sm:$0xff]
    %v1271 = vld [vmem:[%s1 + $0x298] sm:$0xff]
    %v1272 = vld [vmem:[%s1 + $0x2a0] sm:$0xff]
    %v1273 = vld [vmem:[%s1 + $0x2a8] sm:$0xff]
    %v1274 = vld [vmem:[%s1 + $0x2b0] sm:$0xff]
    %v1275 = vld [vmem:[%s1 + $0x2b8] sm:$0xff]
    %v1277 = vsel %vm301, %v1251, 0
    %1279 = vmatprep.subr.mxu0 0.0
    %1280 = vmatpush1.msra.mxu0 %v1252
    %1281 = vmatprep.subr.mxu0 0.0
    %1282 = vmatpush1.msra.mxu0 %v1253
    %1283 = vmatprep.subr.mxu0 0.0
    %1284 = vmatpush1.msra.mxu0 %v1254
    %1285 = vmatprep.subr.mxu0 0.0
    %1286 = vmatpush1.msra.mxu0 %v1255
    %1287 = vmatprep.subr.mxu0 0.0
    %1288 = vmatpush1.msra.mxu0 %v1256
    %1289 = vmatprep.subr.mxu0 0.0
    %1290 = vmatpush1.msra.mxu0 %v1257
    %1291 = vmatprep.subr.mxu0 0.0
    %1292 = vmatpush1.msra.mxu0 %v1258
    %1293 = vmatprep.subr.mxu0 0.0
    %1294 = vmatpush1.msra.mxu0 %v1259
    %1295 = vmatprep.subr.mxu0 0.0
    %1296 = vmatpush1.msra.mxu0 %v1260
    %1297 = vmatprep.subr.mxu0 0.0
    %1298 = vmatpush1.msra.mxu0 %v1261
    %1299 = vmatprep.subr.mxu0 0.0
    %1300 = vmatpush1.msra.mxu0 %v1262
    %1301 = vmatprep.subr.mxu0 0.0
    %1302 = vmatpush1.msra.mxu0 %v1263
    %1303 = vmatprep.subr.mxu0 0.0
    %1304 = vmatpush1.msra.mxu0 %v1264
    %1305 = vmatprep.subr.mxu0 0.0
    %1306 = vmatpush1.msra.mxu0 %v1265
    %1307 = vmatprep.subr.mxu0 0.0
    %1308 = vmatpush1.msra.mxu0 %v1266
    %1309 = vmatprep.subr.mxu0 0.0
    %1310 = vmatpush1.msra.mxu0 %v1267
    %1311 = vmatprep.subr.mxu0 0.0
    %1312 = vmatpush1.msra.mxu0 %v1268
    %1313 = vmatprep.subr.mxu0 0.0
    %1314 = vmatpush1.msra.mxu0 %v1269
    %1315 = vmatprep.subr.mxu0 0.0
    %1316 = vmatpush1.msra.mxu0 %v1270
    %1317 = vmatprep.subr.mxu0 0.0
    %1318 = vmatpush1.msra.mxu0 %v1271
    %1319 = vmatprep.subr.mxu0 0.0
    %1320 = vmatpush1.msra.mxu0 %v1272
    %1321 = vmatprep.subr.mxu0 0.0
    %1322 = vmatpush1.msra.mxu0 %v1273
    %1323 = vmatprep.subr.mxu0 0.0
    %1324 = vmatpush1.msra.mxu0 %v1274
    %1325 = vmatprep.subr.mxu0 0.0
    %1326 = vmatpush1.msra.mxu0 %v1275
    %1327 = vmatprep.subr.mxu0 0.0
    %1328 = vmatpush1.msra.mxu0 0.0
    %1329 = vmatprep.subr.mxu0 0.0
    %1330 = vmatpush1.msra.mxu0 0.0
    %1331 = vmatprep.subr.mxu0 0.0
    %1332 = vmatpush1.msra.mxu0 0.0
    %1333 = vmatprep.subr.mxu0 0.0
    %1334 = vmatpush1.msra.mxu0 0.0
    %1335 = vmatprep.subr.mxu0 0.0
    %1336 = vmatpush1.msra.mxu0 0.0
    %1337 = vmatprep.subr.mxu0 0.0
    %1338 = vmatpush1.msra.mxu0 0.0
    %1339 = vmatprep.subr.mxu0 0.0
    %1340 = vmatpush1.msra.mxu0 0.0
    %1341 = vmatprep.subr.mxu0 0.0
    %1342 = vmatpush1.msra.mxu0 0.0
    %1343 = vmatprep.mubr.f32.mxu0 %v1277
    %1344 = vmatmul.mubr.f32.gmra.mrb[0].mxu0 %v1250
    %v1345 = vpop.f32.mrb[0].mxu0
    %v1346 = vadd.f32 %v53, %v1345
    %v1347 = vpop.f32.mrb[0].mxu0
    %1348 = vdwg.mxu0
    %v1349 = vld [vmem:[%s1 + $0x2c0] sm:$0xff]
    %v1350 = vld [vmem:[%s1 + $0x2c8] sm:$0xff]
    %v1351 = vld [vmem:[%s1 + $0x2d0] sm:$0xff]
    %v1352 = vld [vmem:[%s1 + $0x2d8] sm:$0xff]
    %v1354 = vsel %vm64, %v1346, 0
    %1356 = vmatprep.subr.mxu0 0.0
    %1357 = vmatpush1.msra.mxu0 %v1349
    %1358 = vmatprep.subr.mxu0 0.0
    %1359 = vmatpush1.msra.mxu0 %v1350
    %1360 = vmatprep.subr.mxu0 0.0
    %1361 = vmatpush1.msra.mxu0 %v1351
    %1362 = vmatprep.subr.mxu0 0.0
    %1363 = vmatpush1.msra.mxu0 %v1352
    %1364 = vmatprep.subr.mxu0 0.0
    %1365 = vmatpush1.msra.mxu0 0.0
    %1366 = vmatprep.subr.mxu0 0.0
    %1367 = vmatpush1.msra.mxu0 0.0
    %1368 = vmatprep.subr.mxu0 0.0
    %1369 = vmatpush1.msra.mxu0 0.0
    %1370 = vmatprep.subr.mxu0 0.0
    %1371 = vmatpush1.msra.mxu0 0.0
    %1372 = vmatprep.subr.mxu0 0.0
    %1373 = vmatpush1.msra.mxu0 0.0
    %1374 = vmatprep.subr.mxu0 0.0
    %1375 = vmatpush1.msra.mxu0 0.0
    %1376 = vmatprep.subr.mxu0 0.0
    %1377 = vmatpush1.msra.mxu0 0.0
    %1378 = vmatprep.subr.mxu0 0.0
    %1379 = vmatpush1.msra.mxu0 0.0
    %1380 = vmatprep.subr.mxu0 0.0
    %1381 = vmatpush1.msra.mxu0 0.0
    %1382 = vmatprep.subr.mxu0 0.0
    %1383 = vmatpush1.msra.mxu0 0.0
    %1384 = vmatprep.subr.mxu0 0.0
    %1385 = vmatpush1.msra.mxu0 0.0
    %1386 = vmatprep.subr.mxu0 0.0
    %1387 = vmatpush1.msra.mxu0 0.0
    %1388 = vmatprep.subr.mxu0 0.0
    %1389 = vmatpush1.msra.mxu0 0.0
    %1390 = vmatprep.subr.mxu0 0.0
    %1391 = vmatpush1.msra.mxu0 0.0
    %1392 = vmatprep.subr.mxu0 0.0
    %1393 = vmatpush1.msra.mxu0 0.0
    %1394 = vmatprep.subr.mxu0 0.0
    %1395 = vmatpush1.msra.mxu0 0.0
    %1396 = vmatprep.subr.mxu0 0.0
    %1397 = vmatpush1.msra.mxu0 0.0
    %1398 = vmatprep.subr.mxu0 0.0
    %1399 = vmatpush1.msra.mxu0 0.0
    %1400 = vmatprep.subr.mxu0 0.0
    %1401 = vmatpush1.msra.mxu0 0.0
    %1402 = vmatprep.subr.mxu0 0.0
    %1403 = vmatpush1.msra.mxu0 0.0
    %1404 = vmatprep.subr.mxu0 0.0
    %1405 = vmatpush1.msra.mxu0 0.0
    %1406 = vmatprep.subr.mxu0 0.0
    %1407 = vmatpush1.msra.mxu0 0.0
    %1408 = vmatprep.subr.mxu0 0.0
    %1409 = vmatpush1.msra.mxu0 0.0
    %1410 = vmatprep.subr.mxu0 0.0
    %1411 = vmatpush1.msra.mxu0 0.0
    %1412 = vmatprep.subr.mxu0 0.0
    %1413 = vmatpush1.msra.mxu0 0.0
    %1414 = vmatprep.subr.mxu0 0.0
    %1415 = vmatpush1.msra.mxu0 0.0
    %1416 = vmatprep.subr.mxu0 0.0
    %1417 = vmatpush1.msra.mxu0 0.0
    %1418 = vmatprep.subr.mxu0 0.0
    %1419 = vmatpush1.msra.mxu0 0.0
    %1420 = vmatprep.mubr.f32.mxu0 0.0
    %1421 = vmatmul.mubr.f32.gmra.mrb[0].mxu0 %v1354
    %v1422 = vpop.f32.mrb[0].mxu0
    %v1423 = vadd.f32 %v58, %v1422
    %v1424 = vpop.f32.mrb[0].mxu0
    %1425 = vdwg.mxu0
    %vm1426 = vcmask 130048
    %1427 = vst.msk [vmem:[#allocation3] sm:$0xff] %vm1426, %v1423
    // Predicated region
    $region14: #{tpu_custom_call.1} parent=1 // pred_check
      _
    $region15: #{tpu_custom_call.1} parent=1 // pred_check_branch
      %1429 = sbr.rel (0) target = $region17
    $region16: #{tpu_custom_call.1} parent=1 // pred_region
      %s1431 = ssub.s32 128, 128
      %1432 = vsyncadd [#allocation4], %s1431
      %s1434 = sshll.u32 [#allocation3], 4
      %s1435 = int_to_ptr.vmem [resolvable:$true] %s1434
      %1437 = dma.vmem_to_hbm [thread:$0]  %s1435, 128, %s3, [#allocation4]
    $region17: #{tpu_custom_call.1} parent=1 // pred_fallthru
      _
    // Predicated region
    $region18: #{tpu_custom_call.1} parent=1 // pred_check
      _
    $region19: #{tpu_custom_call.1} parent=1 // pred_check_branch
      %1439 = sbr.rel (0) target = $region21
    $region20: #{tpu_custom_call.1} parent=1 // pred_region
      %1440 = dma.done [#allocation4], 128
    $region21: #{tpu_custom_call.1} parent=1 // pred_fallthru
      _
    %1441 = vsyncpa [#allocation4], 1

</llo_original>
